<compile_context>
chip_gen: v6e
topology: v6e:2x2x1
jax: 0.10.0
libtpu: 0.0.40
codegen_flags: <defaults>
</compile_context>

<pallas_src>
import functools

import jax
import jax.numpy as jnp
from jax.experimental import pallas as pl
from jax.experimental.pallas import tpu as pltpu


# -----------------------------------------------------------------------------
# LSTM cell elementwise update (3 EUP pushes instead of 5)
# -----------------------------------------------------------------------------
def _cell_update(gates, c, hidden):
    """gates: (B, 4H) f32 pre-activations, PyTorch gate order [i, f, g, o]."""
    H = hidden
    sig = jax.nn.sigmoid(gates)          # one EUP push on the full (B,4H) tile
    tg = jnp.tanh(gates)                 # one EUP push on the full (B,4H) tile
    i_g = sig[:, 0 * H:1 * H]
    f_g = sig[:, 1 * H:2 * H]
    g_g = tg[:, 2 * H:3 * H]
    o_g = sig[:, 3 * H:4 * H]
    c_new = f_g * c + i_g * g_g
    h_new = o_g * jnp.tanh(c_new)        # third EUP push
    return h_new, c_new


# -----------------------------------------------------------------------------
# Fused kernel: wavefronted multi-layer LSTM + FC head (eval mode)
# -----------------------------------------------------------------------------
def _lstm_model_kernel(x_ref, wih0_ref, whh0_ref, bias0_ref, *rest,
                       num_layers, seq_len, batch, hidden, out_features):
    """rest = (wcat_l, bias_l) for layers 1..L-1, then (wfc, bfc, out_ref)."""
    L, T, B, H, O = num_layers, seq_len, batch, hidden, out_features
    layer_refs = rest[:2 * (L - 1)]
    wfc_ref, bfc_ref, out_ref = rest[2 * (L - 1):]

    # Hoisted layer-0 input projection over the WHOLE sequence (independent of the
    # recurrence): one MXU matmul with M = T*B, bias folded in.
    xp0 = jnp.dot(x_ref[...], wih0_ref[...],
                  preferred_element_type=jnp.float32) + bias0_ref[...]   # (T*B, 4H) f32
    whh0 = whh0_ref[...]                                                  # (H, 4H)  bf16

    h = [jnp.zeros((B, H), jnp.float32) for _ in range(L)]
    c = [jnp.zeros((B, H), jnp.float32) for _ in range(L)]

    # Wavefront: step s runs layer l at time t = s - l.  All gate matmuls in one
    # step consume the PREVIOUS step's h values, so the per-layer work within a
    # step is independent and overlaps; chain length is T + L - 1 instead of L*T.
    # T is small and static -> fully unrolled Python loop (all indices static).
    for s in range(T + L - 1):
        h_prev = list(h)                  # snapshot of pre-step hidden states
        gates = [None] * L
        for l in range(L):
            t = s - l
            if not (0 <= t < T):
                continue
            if l == 0:
                gates[0] = xp0[t * B:(t + 1) * B, :] + jnp.dot(
                    h_prev[0].astype(jnp.bfloat16), whh0,
                    preferred_element_type=jnp.float32)
            else:
                # Fused input + recurrent projection: [h_{l-1,t} | h_{l,t-1}] @ Wcat.
                # (nn.LSTM inter-layer dropout is training-only -> identity in eval.)
                wcat_ref, bias_ref = layer_refs[2 * (l - 1):2 * l]
                cat = jnp.concatenate([h_prev[l - 1], h_prev[l]], axis=-1)   # (B, 2H)
                gates[l] = jnp.dot(cat.astype(jnp.bfloat16), wcat_ref[...],
                                   preferred_element_type=jnp.float32) + bias_ref[...]
        for l in range(L):
            t = s - l
            if 0 <= t < T:
                h[l], c[l] = _cell_update(gates[l], c[l], H)

    # self.dropout(out[:, -1, :]) is identity in eval mode; then the FC head.
    # TODO(synk): training-mode dropout (Bernoulli mask via pltpu.prng_*) not implemented.
    h_last = h[L - 1]                                                      # (B, H) f32
    if O == 1:
        # O=1 head: VPU multiply + lane (XLU) reduction — cheaper than an MXU pass
        # that would produce 1 useful column out of 128/256.
        out_ref[...] = jnp.sum(h_last * wfc_ref[...], axis=-1, keepdims=True) + bfc_ref[...]
    else:
        out_ref[...] = jnp.dot(h_last, wfc_ref[...],
                               preferred_element_type=jnp.float32) + bfc_ref[...]


# -----------------------------------------------------------------------------
# Wrapper
# -----------------------------------------------------------------------------
def lstm_model_forward(x_bti, params):
    """Equivalent of LSTMModel.forward in eval mode. x_bti: (B, T, I) f32 -> (B, O) f32."""
    B, T, I = x_bti.shape
    layers = params["lstm"]
    L = len(layers)
    H = layers[0]["w_hh_t"].shape[0]
    O = params["fc"]["w_t"].shape[1]

    # batch_first -> time-major 2-D rows (row = t*B + b); bf16 MXU operand.
    x2d = jnp.transpose(x_bti, (1, 0, 2)).reshape(T * B, I).astype(jnp.bfloat16)

    flat_inputs = [x2d, layers[0]["w_ih_t"], layers[0]["w_hh_t"], layers[0]["bias"]]
    for lyr in layers[1:]:
        wcat = jnp.concatenate([lyr["w_ih_t"], lyr["w_hh_t"]], axis=0)     # (2H, 4H) bf16
        flat_inputs += [wcat, lyr["bias"]]
    if O == 1:
        flat_inputs += [jnp.transpose(params["fc"]["w_t"]), params["fc"]["b"]]  # (1,H),(1,1)
    else:
        flat_inputs += [params["fc"]["w_t"], params["fc"]["b"]]

    kernel = functools.partial(
        _lstm_model_kernel, num_layers=L, seq_len=T, batch=B, hidden=H, out_features=O
    )
    return pl.pallas_call(
        kernel,
        out_shape=jax.ShapeDtypeStruct((B, O), jnp.float32),
        in_specs=[pl.BlockSpec(memory_space=pltpu.MemorySpace.VMEM) for _ in flat_inputs],
        out_specs=pl.BlockSpec(memory_space=pltpu.MemorySpace.VMEM),
        # No grid: the whole working set is a few KiB and the recurrence is one
        # latency chain.  TODO(synk): when scaling (H>=1024 or large T*B), add a
        # T-chunk grid ("arbitrary", h/c carried in VMEM scratch), a batch-parallel
        # axis for v7x's second TensorCore, and set vmem_limit_bytes explicitly.
    )(*flat_inputs)


# -----------------------------------------------------------------------------
# Parameter init (PyTorch LSTM/Linear default: U(-1/sqrt(H), 1/sqrt(H)))
# -----------------------------------------------------------------------------
def init_params(key, input_size, hidden_size, num_layers, output_size):
    bound = hidden_size ** -0.5
    params = {"lstm": []}
    for layer in range(num_layers):
        in_sz = input_size if layer == 0 else hidden_size
        key, k1, k2, k3, k4 = jax.random.split(key, 5)
        w_ih = jax.random.uniform(k1, (4 * hidden_size, in_sz), jnp.float32, -bound, bound)
        w_hh = jax.random.uniform(k2, (4 * hidden_size, hidden_size), jnp.float32, -bound, bound)
        b_ih = jax.random.uniform(k3, (4 * hidden_size,), jnp.float32, -bound, bound)
        b_hh = jax.random.uniform(k4, (4 * hidden_size,), jnp.float32, -bound, bound)
        params["lstm"].append(
            {
                "w_ih_t": w_ih.T.astype(jnp.bfloat16),   # (in, 4H)  bf16 MXU operand
                "w_hh_t": w_hh.T.astype(jnp.bfloat16),   # (H, 4H)   bf16 MXU operand
                "bias": (b_ih + b_hh)[None, :],          # (1, 4H)   f32
            }
        )
    key, k5, k6 = jax.random.split(key, 3)
    w_fc = jax.random.uniform(k5, (output_size, hidden_size), jnp.float32, -bound, bound)
    b_fc = jax.random.uniform(k6, (output_size,), jnp.float32, -bound, bound)
    params["fc"] = {"w_t": w_fc.T, "b": b_fc[None, :]}   # (H, O), (1, O) f32
    return params


# -----------------------------------------------------------------------------
# Pure-JAX reference mirroring the kernel's precision exactly:
# bf16-rounded MXU operands (inputs, h, weights), f32 accumulation / elementwise.
# -----------------------------------------------------------------------------
def lstm_model_reference(x_bti, params):
    B, T, _ = x_bti.shape

    def bf(v):  # bf16 round-trip, as seen by the MXU in the kernel
        return v.astype(jnp.bfloat16).astype(jnp.float32)

    seq = x_bti.astype(jnp.float32)
    for lyr in params["lstm"]:
        wih = lyr["w_ih_t"].astype(jnp.float32)
        whh = lyr["w_hh_t"].astype(jnp.float32)
        b = lyr["bias"]
        H = whh.shape[0]
        h = jnp.zeros((B, H), jnp.float32)
        c = jnp.zeros((B, H), jnp.float32)
        outs = []
        for t in range(T):
            g = bf(seq[:, t, :]) @ wih + bf(h) @ whh + b
            i_g = jax.nn.sigmoid(g[:, :H])
            f_g = jax.nn.sigmoid(g[:, H:2 * H])
            g_g = jnp.tanh(g[:, 2 * H:3 * H])
            o_g = jax.nn.sigmoid(g[:, 3 * H:])
            c = f_g * c + i_g * g_g
            h = o_g * jnp.tanh(c)
            outs.append(h)
        seq = jnp.stack(outs, axis=1)                    # (B, T, H)
    return seq[:, -1, :] @ params["fc"]["w_t"] + params["fc"]["b"]


# -----------------------------------------------------------------------------
# Main
# -----------------------------------------------------------------------------
if __name__ == "__main__":
    BATCH = 2
    SEQ = 8
    INPUT_SIZE = 4
    HIDDEN = 32
    NUM_LAYERS = 2
    OUTPUT = 1

    root = jax.random.PRNGKey(0)
    k_x, k_p = jax.random.split(root)

    x = jax.random.normal(k_x, (BATCH, SEQ, INPUT_SIZE), jnp.float32)   # batch_first (B,T,I)
    params = init_params(k_p, INPUT_SIZE, HIDDEN, NUM_LAYERS, OUTPUT)

    out = jax.jit(lstm_model_forward)(x, params)            # (B, 1)
    jax.block_until_ready(out)
    assert out.shape == (BATCH, OUTPUT)

    ref = lstm_model_reference(x, params)
    assert float(jnp.max(jnp.abs(out - ref))) < 2e-2, "kernel/reference mismatch"

    print("KERNEL_OK")
</pallas_src>

<mosaic_0001>
module attributes {stable_mosaic.version = 11 : i64} {
  func.func @_lstm_model_kernel(%arg0: memref<16x4xbf16, #tpu.memory_space<vmem>>, %arg1: memref<4x128xbf16, #tpu.memory_space<vmem>>, %arg2: memref<32x128xbf16, #tpu.memory_space<vmem>>, %arg3: memref<1x128xf32, #tpu.memory_space<vmem>>, %arg4: memref<64x128xbf16, #tpu.memory_space<vmem>>, %arg5: memref<1x128xf32, #tpu.memory_space<vmem>>, %arg6: memref<1x32xf32, #tpu.memory_space<vmem>>, %arg7: memref<1x1xf32, #tpu.memory_space<vmem>>, %arg8: memref<2x1xf32, #tpu.memory_space<vmem>>) attributes {dimension_semantics = [], scalar_prefetch = 0 : i64, scratch_operands = 0 : i64, tpu.core_type = #tpu.core_type<tc>} {
    %c0 = arith.constant 0 : index
    %c0_0 = arith.constant 0 : index
    %0 = vector.load %arg0[%c0, %c0_0] : memref<16x4xbf16, #tpu.memory_space<vmem>>, vector<16x4xbf16>
    %c0_1 = arith.constant 0 : index
    %c0_2 = arith.constant 0 : index
    %1 = vector.load %arg1[%c0_1, %c0_2] : memref<4x128xbf16, #tpu.memory_space<vmem>>, vector<4x128xbf16>
    %cst = arith.constant dense<0.000000e+00> : vector<16x128xf32>
    %2 = tpu.matmul %0, %1, %cst {dimension_numbers = #tpu.dot_dimension_numbers<[1], [0], [0], [1], [0, 0, 1, 1], [], []>} : vector<16x4xbf16>, vector<4x128xbf16>, vector<16x128xf32> -> vector<16x128xf32>
    %c0_3 = arith.constant 0 : index
    %c0_4 = arith.constant 0 : index
    %3 = vector.load %arg3[%c0_3, %c0_4] : memref<1x128xf32, #tpu.memory_space<vmem>>, vector<1x128xf32>
    %4 = vector.broadcast %3 : vector<1x128xf32> to vector<16x128xf32>
    %5 = arith.addf %2, %4 : vector<16x128xf32>
    %c0_5 = arith.constant 0 : index
    %c0_6 = arith.constant 0 : index
    %6 = vector.load %arg2[%c0_5, %c0_6] : memref<32x128xbf16, #tpu.memory_space<vmem>>, vector<32x128xbf16>
    %cst_7 = arith.constant 0.000000e+00 : f32
    %7 = vector.broadcast %cst_7 : f32 to vector<2x32xf32>
    %cst_8 = arith.constant 0.000000e+00 : f32
    %8 = vector.broadcast %cst_8 : f32 to vector<2x32xf32>
    %cst_9 = arith.constant 0.000000e+00 : f32
    %9 = vector.broadcast %cst_9 : f32 to vector<2x32xf32>
    %cst_10 = arith.constant 0.000000e+00 : f32
    %10 = vector.broadcast %cst_10 : f32 to vector<2x32xf32>
    %11 = vector.extract_strided_slice %5 {offsets = [0, 0], sizes = [2, 128], strides = [1, 1]} : vector<16x128xf32> to vector<2x128xf32>
    %12 = arith.truncf %7 : vector<2x32xf32> to vector<2x32xbf16>
    %cst_11 = arith.constant dense<0.000000e+00> : vector<2x128xf32>
    %13 = tpu.matmul %12, %6, %cst_11 {dimension_numbers = #tpu.dot_dimension_numbers<[1], [0], [0], [1], [0, 0, 1, 1], [], []>} : vector<2x32xbf16>, vector<32x128xbf16>, vector<2x128xf32> -> vector<2x128xf32>
    %14 = arith.addf %11, %13 : vector<2x128xf32>
    %15 = arith.negf %14 : vector<2x128xf32>
    %16 = math.exp %15 : vector<2x128xf32>
    %cst_12 = arith.constant 1.000000e+00 : f32
    %17 = vector.broadcast %cst_12 : f32 to vector<2x128xf32>
    %18 = arith.addf %17, %16 : vector<2x128xf32>
    %19 = arith.divf %17, %18 : vector<2x128xf32>
    %20 = math.tanh %14 : vector<2x128xf32>
    %21 = vector.extract_strided_slice %19 {offsets = [0, 0], sizes = [2, 32], strides = [1, 1]} : vector<2x128xf32> to vector<2x32xf32>
    %22 = vector.extract_strided_slice %19 {offsets = [0, 32], sizes = [2, 32], strides = [1, 1]} : vector<2x128xf32> to vector<2x32xf32>
    %23 = vector.extract_strided_slice %20 {offsets = [0, 64], sizes = [2, 32], strides = [1, 1]} : vector<2x128xf32> to vector<2x32xf32>
    %24 = vector.extract_strided_slice %19 {offsets = [0, 96], sizes = [2, 32], strides = [1, 1]} : vector<2x128xf32> to vector<2x32xf32>
    %25 = arith.mulf %22, %9 : vector<2x32xf32>
    %26 = arith.mulf %21, %23 : vector<2x32xf32>
    %27 = arith.addf %25, %26 : vector<2x32xf32>
    %28 = math.tanh %27 : vector<2x32xf32>
    %29 = arith.mulf %24, %28 : vector<2x32xf32>
    %30 = vector.extract_strided_slice %5 {offsets = [2, 0], sizes = [2, 128], strides = [1, 1]} : vector<16x128xf32> to vector<2x128xf32>
    %31 = arith.truncf %29 : vector<2x32xf32> to vector<2x32xbf16>
    %cst_13 = arith.constant dense<0.000000e+00> : vector<2x128xf32>
    %32 = tpu.matmul %31, %6, %cst_13 {dimension_numbers = #tpu.dot_dimension_numbers<[1], [0], [0], [1], [0, 0, 1, 1], [], []>} : vector<2x32xbf16>, vector<32x128xbf16>, vector<2x128xf32> -> vector<2x128xf32>
    %33 = arith.addf %30, %32 : vector<2x128xf32>
    %34 = tpu.concatenate %29, %8 in 1 : vector<2x32xf32>, vector<2x32xf32> -> vector<2x64xf32>
    %35 = arith.truncf %34 : vector<2x64xf32> to vector<2x64xbf16>
    %c0_14 = arith.constant 0 : index
    %c0_15 = arith.constant 0 : index
    %36 = vector.load %arg4[%c0_14, %c0_15] : memref<64x128xbf16, #tpu.memory_space<vmem>>, vector<64x128xbf16>
    %cst_16 = arith.constant dense<0.000000e+00> : vector<2x128xf32>
    %37 = tpu.matmul %35, %36, %cst_16 {dimension_numbers = #tpu.dot_dimension_numbers<[1], [0], [0], [1], [0, 0, 1, 1], [], []>} : vector<2x64xbf16>, vector<64x128xbf16>, vector<2x128xf32> -> vector<2x128xf32>
    %c0_17 = arith.constant 0 : index
    %c0_18 = arith.constant 0 : index
    %38 = vector.load %arg5[%c0_17, %c0_18] : memref<1x128xf32, #tpu.memory_space<vmem>>, vector<1x128xf32>
    %39 = vector.broadcast %38 : vector<1x128xf32> to vector<2x128xf32>
    %40 = arith.addf %37, %39 : vector<2x128xf32>
    %41 = arith.negf %33 : vector<2x128xf32>
    %42 = math.exp %41 : vector<2x128xf32>
    %cst_19 = arith.constant 1.000000e+00 : f32
    %43 = vector.broadcast %cst_19 : f32 to vector<2x128xf32>
    %44 = arith.addf %43, %42 : vector<2x128xf32>
    %45 = arith.divf %43, %44 : vector<2x128xf32>
    %46 = math.tanh %33 : vector<2x128xf32>
    %47 = vector.extract_strided_slice %45 {offsets = [0, 0], sizes = [2, 32], strides = [1, 1]} : vector<2x128xf32> to vector<2x32xf32>
    %48 = vector.extract_strided_slice %45 {offsets = [0, 32], sizes = [2, 32], strides = [1, 1]} : vector<2x128xf32> to vector<2x32xf32>
    %49 = vector.extract_strided_slice %46 {offsets = [0, 64], sizes = [2, 32], strides = [1, 1]} : vector<2x128xf32> to vector<2x32xf32>
    %50 = vector.extract_strided_slice %45 {offsets = [0, 96], sizes = [2, 32], strides = [1, 1]} : vector<2x128xf32> to vector<2x32xf32>
    %51 = arith.mulf %48, %27 : vector<2x32xf32>
    %52 = arith.mulf %47, %49 : vector<2x32xf32>
    %53 = arith.addf %51, %52 : vector<2x32xf32>
    %54 = math.tanh %53 : vector<2x32xf32>
    %55 = arith.mulf %50, %54 : vector<2x32xf32>
    %56 = arith.negf %40 : vector<2x128xf32>
    %57 = math.exp %56 : vector<2x128xf32>
    %cst_20 = arith.constant 1.000000e+00 : f32
    %58 = vector.broadcast %cst_20 : f32 to vector<2x128xf32>
    %59 = arith.addf %58, %57 : vector<2x128xf32>
    %60 = arith.divf %58, %59 : vector<2x128xf32>
    %61 = math.tanh %40 : vector<2x128xf32>
    %62 = vector.extract_strided_slice %60 {offsets = [0, 0], sizes = [2, 32], strides = [1, 1]} : vector<2x128xf32> to vector<2x32xf32>
    %63 = vector.extract_strided_slice %60 {offsets = [0, 32], sizes = [2, 32], strides = [1, 1]} : vector<2x128xf32> to vector<2x32xf32>
    %64 = vector.extract_strided_slice %61 {offsets = [0, 64], sizes = [2, 32], strides = [1, 1]} : vector<2x128xf32> to vector<2x32xf32>
    %65 = vector.extract_strided_slice %60 {offsets = [0, 96], sizes = [2, 32], strides = [1, 1]} : vector<2x128xf32> to vector<2x32xf32>
    %66 = arith.mulf %63, %10 : vector<2x32xf32>
    %67 = arith.mulf %62, %64 : vector<2x32xf32>
    %68 = arith.addf %66, %67 : vector<2x32xf32>
    %69 = math.tanh %68 : vector<2x32xf32>
    %70 = arith.mulf %65, %69 : vector<2x32xf32>
    %71 = vector.extract_strided_slice %5 {offsets = [4, 0], sizes = [2, 128], strides = [1, 1]} : vector<16x128xf32> to vector<2x128xf32>
    %72 = arith.truncf %55 : vector<2x32xf32> to vector<2x32xbf16>
    %cst_21 = arith.constant dense<0.000000e+00> : vector<2x128xf32>
    %73 = tpu.matmul %72, %6, %cst_21 {dimension_numbers = #tpu.dot_dimension_numbers<[1], [0], [0], [1], [0, 0, 1, 1], [], []>} : vector<2x32xbf16>, vector<32x128xbf16>, vector<2x128xf32> -> vector<2x128xf32>
    %74 = arith.addf %71, %73 : vector<2x128xf32>
    %75 = tpu.concatenate %55, %70 in 1 : vector<2x32xf32>, vector<2x32xf32> -> vector<2x64xf32>
    %76 = arith.truncf %75 : vector<2x64xf32> to vector<2x64xbf16>
    %c0_22 = arith.constant 0 : index
    %c0_23 = arith.constant 0 : index
    %77 = vector.load %arg4[%c0_22, %c0_23] : memref<64x128xbf16, #tpu.memory_space<vmem>>, vector<64x128xbf16>
    %cst_24 = arith.constant dense<0.000000e+00> : vector<2x128xf32>
    %78 = tpu.matmul %76, %77, %cst_24 {dimension_numbers = #tpu.dot_dimension_numbers<[1], [0], [0], [1], [0, 0, 1, 1], [], []>} : vector<2x64xbf16>, vector<64x128xbf16>, vector<2x128xf32> -> vector<2x128xf32>
    %c0_25 = arith.constant 0 : index
    %c0_26 = arith.constant 0 : index
    %79 = vector.load %arg5[%c0_25, %c0_26] : memref<1x128xf32, #tpu.memory_space<vmem>>, vector<1x128xf32>
    %80 = vector.broadcast %79 : vector<1x128xf32> to vector<2x128xf32>
    %81 = arith.addf %78, %80 : vector<2x128xf32>
    %82 = arith.negf %74 : vector<2x128xf32>
    %83 = math.exp %82 : vector<2x128xf32>
    %cst_27 = arith.constant 1.000000e+00 : f32
    %84 = vector.broadcast %cst_27 : f32 to vector<2x128xf32>
    %85 = arith.addf %84, %83 : vector<2x128xf32>
    %86 = arith.divf %84, %85 : vector<2x128xf32>
    %87 = math.tanh %74 : vector<2x128xf32>
    %88 = vector.extract_strided_slice %86 {offsets = [0, 0], sizes = [2, 32], strides = [1, 1]} : vector<2x128xf32> to vector<2x32xf32>
    %89 = vector.extract_strided_slice %86 {offsets = [0, 32], sizes = [2, 32], strides = [1, 1]} : vector<2x128xf32> to vector<2x32xf32>
    %90 = vector.extract_strided_slice %87 {offsets = [0, 64], sizes = [2, 32], strides = [1, 1]} : vector<2x128xf32> to vector<2x32xf32>
    %91 = vector.extract_strided_slice %86 {offsets = [0, 96], sizes = [2, 32], strides = [1, 1]} : vector<2x128xf32> to vector<2x32xf32>
    %92 = arith.mulf %89, %53 : vector<2x32xf32>
    %93 = arith.mulf %88, %90 : vector<2x32xf32>
    %94 = arith.addf %92, %93 : vector<2x32xf32>
    %95 = math.tanh %94 : vector<2x32xf32>
    %96 = arith.mulf %91, %95 : vector<2x32xf32>
    %97 = arith.negf %81 : vector<2x128xf32>
    %98 = math.exp %97 : vector<2x128xf32>
    %cst_28 = arith.constant 1.000000e+00 : f32
    %99 = vector.broadcast %cst_28 : f32 to vector<2x128xf32>
    %100 = arith.addf %99, %98 : vector<2x128xf32>
    %101 = arith.divf %99, %100 : vector<2x128xf32>
    %102 = math.tanh %81 : vector<2x128xf32>
    %103 = vector.extract_strided_slice %101 {offsets = [0, 0], sizes = [2, 32], strides = [1, 1]} : vector<2x128xf32> to vector<2x32xf32>
    %104 = vector.extract_strided_slice %101 {offsets = [0, 32], sizes = [2, 32], strides = [1, 1]} : vector<2x128xf32> to vector<2x32xf32>
    %105 = vector.extract_strided_slice %102 {offsets = [0, 64], sizes = [2, 32], strides = [1, 1]} : vector<2x128xf32> to vector<2x32xf32>
    %106 = vector.extract_strided_slice %101 {offsets = [0, 96], sizes = [2, 32], strides = [1, 1]} : vector<2x128xf32> to vector<2x32xf32>
    %107 = arith.mulf %104, %68 : vector<2x32xf32>
    %108 = arith.mulf %103, %105 : vector<2x32xf32>
    %109 = arith.addf %107, %108 : vector<2x32xf32>
    %110 = math.tanh %109 : vector<2x32xf32>
    %111 = arith.mulf %106, %110 : vector<2x32xf32>
    %112 = vector.extract_strided_slice %5 {offsets = [6, 0], sizes = [2, 128], strides = [1, 1]} : vector<16x128xf32> to vector<2x128xf32>
    %113 = arith.truncf %96 : vector<2x32xf32> to vector<2x32xbf16>
    %cst_29 = arith.constant dense<0.000000e+00> : vector<2x128xf32>
    %114 = tpu.matmul %113, %6, %cst_29 {dimension_numbers = #tpu.dot_dimension_numbers<[1], [0], [0], [1], [0, 0, 1, 1], [], []>} : vector<2x32xbf16>, vector<32x128xbf16>, vector<2x128xf32> -> vector<2x128xf32>
    %115 = arith.addf %112, %114 : vector<2x128xf32>
    %116 = tpu.concatenate %96, %111 in 1 : vector<2x32xf32>, vector<2x32xf32> -> vector<2x64xf32>
    %117 = arith.truncf %116 : vector<2x64xf32> to vector<2x64xbf16>
    %c0_30 = arith.constant 0 : index
    %c0_31 = arith.constant 0 : index
    %118 = vector.load %arg4[%c0_30, %c0_31] : memref<64x128xbf16, #tpu.memory_space<vmem>>, vector<64x128xbf16>
    %cst_32 = arith.constant dense<0.000000e+00> : vector<2x128xf32>
    %119 = tpu.matmul %117, %118, %cst_32 {dimension_numbers = #tpu.dot_dimension_numbers<[1], [0], [0], [1], [0, 0, 1, 1], [], []>} : vector<2x64xbf16>, vector<64x128xbf16>, vector<2x128xf32> -> vector<2x128xf32>
    %c0_33 = arith.constant 0 : index
    %c0_34 = arith.constant 0 : index
    %120 = vector.load %arg5[%c0_33, %c0_34] : memref<1x128xf32, #tpu.memory_space<vmem>>, vector<1x128xf32>
    %121 = vector.broadcast %120 : vector<1x128xf32> to vector<2x128xf32>
    %122 = arith.addf %119, %121 : vector<2x128xf32>
    %123 = arith.negf %115 : vector<2x128xf32>
    %124 = math.exp %123 : vector<2x128xf32>
    %cst_35 = arith.constant 1.000000e+00 : f32
    %125 = vector.broadcast %cst_35 : f32 to vector<2x128xf32>
    %126 = arith.addf %125, %124 : vector<2x128xf32>
    %127 = arith.divf %125, %126 : vector<2x128xf32>
    %128 = math.tanh %115 : vector<2x128xf32>
    %129 = vector.extract_strided_slice %127 {offsets = [0, 0], sizes = [2, 32], strides = [1, 1]} : vector<2x128xf32> to vector<2x32xf32>
    %130 = vector.extract_strided_slice %127 {offsets = [0, 32], sizes = [2, 32], strides = [1, 1]} : vector<2x128xf32> to vector<2x32xf32>
    %131 = vector.extract_strided_slice %128 {offsets = [0, 64], sizes = [2, 32], strides = [1, 1]} : vector<2x128xf32> to vector<2x32xf32>
    %132 = vector.extract_strided_slice %127 {offsets = [0, 96], sizes = [2, 32], strides = [1, 1]} : vector<2x128xf32> to vector<2x32xf32>
    %133 = arith.mulf %130, %94 : vector<2x32xf32>
    %134 = arith.mulf %129, %131 : vector<2x32xf32>
    %135 = arith.addf %133, %134 : vector<2x32xf32>
    %136 = math.tanh %135 : vector<2x32xf32>
    %137 = arith.mulf %132, %136 : vector<2x32xf32>
    %138 = arith.negf %122 : vector<2x128xf32>
    %139 = math.exp %138 : vector<2x128xf32>
    %cst_36 = arith.constant 1.000000e+00 : f32
    %140 = vector.broadcast %cst_36 : f32 to vector<2x128xf32>
    %141 = arith.addf %140, %139 : vector<2x128xf32>
    %142 = arith.divf %140, %141 : vector<2x128xf32>
    %143 = math.tanh %122 : vector<2x128xf32>
    %144 = vector.extract_strided_slice %142 {offsets = [0, 0], sizes = [2, 32], strides = [1, 1]} : vector<2x128xf32> to vector<2x32xf32>
    %145 = vector.extract_strided_slice %142 {offsets = [0, 32], sizes = [2, 32], strides = [1, 1]} : vector<2x128xf32> to vector<2x32xf32>
    %146 = vector.extract_strided_slice %143 {offsets = [0, 64], sizes = [2, 32], strides = [1, 1]} : vector<2x128xf32> to vector<2x32xf32>
    %147 = vector.extract_strided_slice %142 {offsets = [0, 96], sizes = [2, 32], strides = [1, 1]} : vector<2x128xf32> to vector<2x32xf32>
    %148 = arith.mulf %145, %109 : vector<2x32xf32>
    %149 = arith.mulf %144, %146 : vector<2x32xf32>
    %150 = arith.addf %148, %149 : vector<2x32xf32>
    %151 = math.tanh %150 : vector<2x32xf32>
    %152 = arith.mulf %147, %151 : vector<2x32xf32>
    %153 = vector.extract_strided_slice %5 {offsets = [8, 0], sizes = [2, 128], strides = [1, 1]} : vector<16x128xf32> to vector<2x128xf32>
    %154 = arith.truncf %137 : vector<2x32xf32> to vector<2x32xbf16>
    %cst_37 = arith.constant dense<0.000000e+00> : vector<2x128xf32>
    %155 = tpu.matmul %154, %6, %cst_37 {dimension_numbers = #tpu.dot_dimension_numbers<[1], [0], [0], [1], [0, 0, 1, 1], [], []>} : vector<2x32xbf16>, vector<32x128xbf16>, vector<2x128xf32> -> vector<2x128xf32>
    %156 = arith.addf %153, %155 : vector<2x128xf32>
    %157 = tpu.concatenate %137, %152 in 1 : vector<2x32xf32>, vector<2x32xf32> -> vector<2x64xf32>
    %158 = arith.truncf %157 : vector<2x64xf32> to vector<2x64xbf16>
    %c0_38 = arith.constant 0 : index
    %c0_39 = arith.constant 0 : index
    %159 = vector.load %arg4[%c0_38, %c0_39] : memref<64x128xbf16, #tpu.memory_space<vmem>>, vector<64x128xbf16>
    %cst_40 = arith.constant dense<0.000000e+00> : vector<2x128xf32>
    %160 = tpu.matmul %158, %159, %cst_40 {dimension_numbers = #tpu.dot_dimension_numbers<[1], [0], [0], [1], [0, 0, 1, 1], [], []>} : vector<2x64xbf16>, vector<64x128xbf16>, vector<2x128xf32> -> vector<2x128xf32>
    %c0_41 = arith.constant 0 : index
    %c0_42 = arith.constant 0 : index
    %161 = vector.load %arg5[%c0_41, %c0_42] : memref<1x128xf32, #tpu.memory_space<vmem>>, vector<1x128xf32>
    %162 = vector.broadcast %161 : vector<1x128xf32> to vector<2x128xf32>
    %163 = arith.addf %160, %162 : vector<2x128xf32>
    %164 = arith.negf %156 : vector<2x128xf32>
    %165 = math.exp %164 : vector<2x128xf32>
    %cst_43 = arith.constant 1.000000e+00 : f32
    %166 = vector.broadcast %cst_43 : f32 to vector<2x128xf32>
    %167 = arith.addf %166, %165 : vector<2x128xf32>
    %168 = arith.divf %166, %167 : vector<2x128xf32>
    %169 = math.tanh %156 : vector<2x128xf32>
    %170 = vector.extract_strided_slice %168 {offsets = [0, 0], sizes = [2, 32], strides = [1, 1]} : vector<2x128xf32> to vector<2x32xf32>
    %171 = vector.extract_strided_slice %168 {offsets = [0, 32], sizes = [2, 32], strides = [1, 1]} : vector<2x128xf32> to vector<2x32xf32>
    %172 = vector.extract_strided_slice %169 {offsets = [0, 64], sizes = [2, 32], strides = [1, 1]} : vector<2x128xf32> to vector<2x32xf32>
    %173 = vector.extract_strided_slice %168 {offsets = [0, 96], sizes = [2, 32], strides = [1, 1]} : vector<2x128xf32> to vector<2x32xf32>
    %174 = arith.mulf %171, %135 : vector<2x32xf32>
    %175 = arith.mulf %170, %172 : vector<2x32xf32>
    %176 = arith.addf %174, %175 : vector<2x32xf32>
    %177 = math.tanh %176 : vector<2x32xf32>
    %178 = arith.mulf %173, %177 : vector<2x32xf32>
    %179 = arith.negf %163 : vector<2x128xf32>
    %180 = math.exp %179 : vector<2x128xf32>
    %cst_44 = arith.constant 1.000000e+00 : f32
    %181 = vector.broadcast %cst_44 : f32 to vector<2x128xf32>
    %182 = arith.addf %181, %180 : vector<2x128xf32>
    %183 = arith.divf %181, %182 : vector<2x128xf32>
    %184 = math.tanh %163 : vector<2x128xf32>
    %185 = vector.extract_strided_slice %183 {offsets = [0, 0], sizes = [2, 32], strides = [1, 1]} : vector<2x128xf32> to vector<2x32xf32>
    %186 = vector.extract_strided_slice %183 {offsets = [0, 32], sizes = [2, 32], strides = [1, 1]} : vector<2x128xf32> to vector<2x32xf32>
    %187 = vector.extract_strided_slice %184 {offsets = [0, 64], sizes = [2, 32], strides = [1, 1]} : vector<2x128xf32> to vector<2x32xf32>
    %188 = vector.extract_strided_slice %183 {offsets = [0, 96], sizes = [2, 32], strides = [1, 1]} : vector<2x128xf32> to vector<2x32xf32>
    %189 = arith.mulf %186, %150 : vector<2x32xf32>
    %190 = arith.mulf %185, %187 : vector<2x32xf32>
    %191 = arith.addf %189, %190 : vector<2x32xf32>
    %192 = math.tanh %191 : vector<2x32xf32>
    %193 = arith.mulf %188, %192 : vector<2x32xf32>
    %194 = vector.extract_strided_slice %5 {offsets = [10, 0], sizes = [2, 128], strides = [1, 1]} : vector<16x128xf32> to vector<2x128xf32>
    %195 = arith.truncf %178 : vector<2x32xf32> to vector<2x32xbf16>
    %cst_45 = arith.constant dense<0.000000e+00> : vector<2x128xf32>
    %196 = tpu.matmul %195, %6, %cst_45 {dimension_numbers = #tpu.dot_dimension_numbers<[1], [0], [0], [1], [0, 0, 1, 1], [], []>} : vector<2x32xbf16>, vector<32x128xbf16>, vector<2x128xf32> -> vector<2x128xf32>
    %197 = arith.addf %194, %196 : vector<2x128xf32>
    %198 = tpu.concatenate %178, %193 in 1 : vector<2x32xf32>, vector<2x32xf32> -> vector<2x64xf32>
    %199 = arith.truncf %198 : vector<2x64xf32> to vector<2x64xbf16>
    %c0_46 = arith.constant 0 : index
    %c0_47 = arith.constant 0 : index
    %200 = vector.load %arg4[%c0_46, %c0_47] : memref<64x128xbf16, #tpu.memory_space<vmem>>, vector<64x128xbf16>
    %cst_48 = arith.constant dense<0.000000e+00> : vector<2x128xf32>
    %201 = tpu.matmul %199, %200, %cst_48 {dimension_numbers = #tpu.dot_dimension_numbers<[1], [0], [0], [1], [0, 0, 1, 1], [], []>} : vector<2x64xbf16>, vector<64x128xbf16>, vector<2x128xf32> -> vector<2x128xf32>
    %c0_49 = arith.constant 0 : index
    %c0_50 = arith.constant 0 : index
    %202 = vector.load %arg5[%c0_49, %c0_50] : memref<1x128xf32, #tpu.memory_space<vmem>>, vector<1x128xf32>
    %203 = vector.broadcast %202 : vector<1x128xf32> to vector<2x128xf32>
    %204 = arith.addf %201, %203 : vector<2x128xf32>
    %205 = arith.negf %197 : vector<2x128xf32>
    %206 = math.exp %205 : vector<2x128xf32>
    %cst_51 = arith.constant 1.000000e+00 : f32
    %207 = vector.broadcast %cst_51 : f32 to vector<2x128xf32>
    %208 = arith.addf %207, %206 : vector<2x128xf32>
    %209 = arith.divf %207, %208 : vector<2x128xf32>
    %210 = math.tanh %197 : vector<2x128xf32>
    %211 = vector.extract_strided_slice %209 {offsets = [0, 0], sizes = [2, 32], strides = [1, 1]} : vector<2x128xf32> to vector<2x32xf32>
    %212 = vector.extract_strided_slice %209 {offsets = [0, 32], sizes = [2, 32], strides = [1, 1]} : vector<2x128xf32> to vector<2x32xf32>
    %213 = vector.extract_strided_slice %210 {offsets = [0, 64], sizes = [2, 32], strides = [1, 1]} : vector<2x128xf32> to vector<2x32xf32>
    %214 = vector.extract_strided_slice %209 {offsets = [0, 96], sizes = [2, 32], strides = [1, 1]} : vector<2x128xf32> to vector<2x32xf32>
    %215 = arith.mulf %212, %176 : vector<2x32xf32>
    %216 = arith.mulf %211, %213 : vector<2x32xf32>
    %217 = arith.addf %215, %216 : vector<2x32xf32>
    %218 = math.tanh %217 : vector<2x32xf32>
    %219 = arith.mulf %214, %218 : vector<2x32xf32>
    %220 = arith.negf %204 : vector<2x128xf32>
    %221 = math.exp %220 : vector<2x128xf32>
    %cst_52 = arith.constant 1.000000e+00 : f32
    %222 = vector.broadcast %cst_52 : f32 to vector<2x128xf32>
    %223 = arith.addf %222, %221 : vector<2x128xf32>
    %224 = arith.divf %222, %223 : vector<2x128xf32>
    %225 = math.tanh %204 : vector<2x128xf32>
    %226 = vector.extract_strided_slice %224 {offsets = [0, 0], sizes = [2, 32], strides = [1, 1]} : vector<2x128xf32> to vector<2x32xf32>
    %227 = vector.extract_strided_slice %224 {offsets = [0, 32], sizes = [2, 32], strides = [1, 1]} : vector<2x128xf32> to vector<2x32xf32>
    %228 = vector.extract_strided_slice %225 {offsets = [0, 64], sizes = [2, 32], strides = [1, 1]} : vector<2x128xf32> to vector<2x32xf32>
    %229 = vector.extract_strided_slice %224 {offsets = [0, 96], sizes = [2, 32], strides = [1, 1]} : vector<2x128xf32> to vector<2x32xf32>
    %230 = arith.mulf %227, %191 : vector<2x32xf32>
    %231 = arith.mulf %226, %228 : vector<2x32xf32>
    %232 = arith.addf %230, %231 : vector<2x32xf32>
    %233 = math.tanh %232 : vector<2x32xf32>
    %234 = arith.mulf %229, %233 : vector<2x32xf32>
    %235 = vector.extract_strided_slice %5 {offsets = [12, 0], sizes = [2, 128], strides = [1, 1]} : vector<16x128xf32> to vector<2x128xf32>
    %236 = arith.truncf %219 : vector<2x32xf32> to vector<2x32xbf16>
    %cst_53 = arith.constant dense<0.000000e+00> : vector<2x128xf32>
    %237 = tpu.matmul %236, %6, %cst_53 {dimension_numbers = #tpu.dot_dimension_numbers<[1], [0], [0], [1], [0, 0, 1, 1], [], []>} : vector<2x32xbf16>, vector<32x128xbf16>, vector<2x128xf32> -> vector<2x128xf32>
    %238 = arith.addf %235, %237 : vector<2x128xf32>
    %239 = tpu.concatenate %219, %234 in 1 : vector<2x32xf32>, vector<2x32xf32> -> vector<2x64xf32>
    %240 = arith.truncf %239 : vector<2x64xf32> to vector<2x64xbf16>
    %c0_54 = arith.constant 0 : index
    %c0_55 = arith.constant 0 : index
    %241 = vector.load %arg4[%c0_54, %c0_55] : memref<64x128xbf16, #tpu.memory_space<vmem>>, vector<64x128xbf16>
    %cst_56 = arith.constant dense<0.000000e+00> : vector<2x128xf32>
    %242 = tpu.matmul %240, %241, %cst_56 {dimension_numbers = #tpu.dot_dimension_numbers<[1], [0], [0], [1], [0, 0, 1, 1], [], []>} : vector<2x64xbf16>, vector<64x128xbf16>, vector<2x128xf32> -> vector<2x128xf32>
    %c0_57 = arith.constant 0 : index
    %c0_58 = arith.constant 0 : index
    %243 = vector.load %arg5[%c0_57, %c0_58] : memref<1x128xf32, #tpu.memory_space<vmem>>, vector<1x128xf32>
    %244 = vector.broadcast %243 : vector<1x128xf32> to vector<2x128xf32>
    %245 = arith.addf %242, %244 : vector<2x128xf32>
    %246 = arith.negf %238 : vector<2x128xf32>
    %247 = math.exp %246 : vector<2x128xf32>
    %cst_59 = arith.constant 1.000000e+00 : f32
    %248 = vector.broadcast %cst_59 : f32 to vector<2x128xf32>
    %249 = arith.addf %248, %247 : vector<2x128xf32>
    %250 = arith.divf %248, %249 : vector<2x128xf32>
    %251 = math.tanh %238 : vector<2x128xf32>
    %252 = vector.extract_strided_slice %250 {offsets = [0, 0], sizes = [2, 32], strides = [1, 1]} : vector<2x128xf32> to vector<2x32xf32>
    %253 = vector.extract_strided_slice %250 {offsets = [0, 32], sizes = [2, 32], strides = [1, 1]} : vector<2x128xf32> to vector<2x32xf32>
    %254 = vector.extract_strided_slice %251 {offsets = [0, 64], sizes = [2, 32], strides = [1, 1]} : vector<2x128xf32> to vector<2x32xf32>
    %255 = vector.extract_strided_slice %250 {offsets = [0, 96], sizes = [2, 32], strides = [1, 1]} : vector<2x128xf32> to vector<2x32xf32>
    %256 = arith.mulf %253, %217 : vector<2x32xf32>
    %257 = arith.mulf %252, %254 : vector<2x32xf32>
    %258 = arith.addf %256, %257 : vector<2x32xf32>
    %259 = math.tanh %258 : vector<2x32xf32>
    %260 = arith.mulf %255, %259 : vector<2x32xf32>
    %261 = arith.negf %245 : vector<2x128xf32>
    %262 = math.exp %261 : vector<2x128xf32>
    %cst_60 = arith.constant 1.000000e+00 : f32
    %263 = vector.broadcast %cst_60 : f32 to vector<2x128xf32>
    %264 = arith.addf %263, %262 : vector<2x128xf32>
    %265 = arith.divf %263, %264 : vector<2x128xf32>
    %266 = math.tanh %245 : vector<2x128xf32>
    %267 = vector.extract_strided_slice %265 {offsets = [0, 0], sizes = [2, 32], strides = [1, 1]} : vector<2x128xf32> to vector<2x32xf32>
    %268 = vector.extract_strided_slice %265 {offsets = [0, 32], sizes = [2, 32], strides = [1, 1]} : vector<2x128xf32> to vector<2x32xf32>
    %269 = vector.extract_strided_slice %266 {offsets = [0, 64], sizes = [2, 32], strides = [1, 1]} : vector<2x128xf32> to vector<2x32xf32>
    %270 = vector.extract_strided_slice %265 {offsets = [0, 96], sizes = [2, 32], strides = [1, 1]} : vector<2x128xf32> to vector<2x32xf32>
    %271 = arith.mulf %268, %232 : vector<2x32xf32>
    %272 = arith.mulf %267, %269 : vector<2x32xf32>
    %273 = arith.addf %271, %272 : vector<2x32xf32>
    %274 = math.tanh %273 : vector<2x32xf32>
    %275 = arith.mulf %270, %274 : vector<2x32xf32>
    %276 = vector.extract_strided_slice %5 {offsets = [14, 0], sizes = [2, 128], strides = [1, 1]} : vector<16x128xf32> to vector<2x128xf32>
    %277 = arith.truncf %260 : vector<2x32xf32> to vector<2x32xbf16>
    %cst_61 = arith.constant dense<0.000000e+00> : vector<2x128xf32>
    %278 = tpu.matmul %277, %6, %cst_61 {dimension_numbers = #tpu.dot_dimension_numbers<[1], [0], [0], [1], [0, 0, 1, 1], [], []>} : vector<2x32xbf16>, vector<32x128xbf16>, vector<2x128xf32> -> vector<2x128xf32>
    %279 = arith.addf %276, %278 : vector<2x128xf32>
    %280 = tpu.concatenate %260, %275 in 1 : vector<2x32xf32>, vector<2x32xf32> -> vector<2x64xf32>
    %281 = arith.truncf %280 : vector<2x64xf32> to vector<2x64xbf16>
    %c0_62 = arith.constant 0 : index
    %c0_63 = arith.constant 0 : index
    %282 = vector.load %arg4[%c0_62, %c0_63] : memref<64x128xbf16, #tpu.memory_space<vmem>>, vector<64x128xbf16>
    %cst_64 = arith.constant dense<0.000000e+00> : vector<2x128xf32>
    %283 = tpu.matmul %281, %282, %cst_64 {dimension_numbers = #tpu.dot_dimension_numbers<[1], [0], [0], [1], [0, 0, 1, 1], [], []>} : vector<2x64xbf16>, vector<64x128xbf16>, vector<2x128xf32> -> vector<2x128xf32>
    %c0_65 = arith.constant 0 : index
    %c0_66 = arith.constant 0 : index
    %284 = vector.load %arg5[%c0_65, %c0_66] : memref<1x128xf32, #tpu.memory_space<vmem>>, vector<1x128xf32>
    %285 = vector.broadcast %284 : vector<1x128xf32> to vector<2x128xf32>
    %286 = arith.addf %283, %285 : vector<2x128xf32>
    %287 = arith.negf %279 : vector<2x128xf32>
    %288 = math.exp %287 : vector<2x128xf32>
    %cst_67 = arith.constant 1.000000e+00 : f32
    %289 = vector.broadcast %cst_67 : f32 to vector<2x128xf32>
    %290 = arith.addf %289, %288 : vector<2x128xf32>
    %291 = arith.divf %289, %290 : vector<2x128xf32>
    %292 = math.tanh %279 : vector<2x128xf32>
    %293 = vector.extract_strided_slice %291 {offsets = [0, 0], sizes = [2, 32], strides = [1, 1]} : vector<2x128xf32> to vector<2x32xf32>
    %294 = vector.extract_strided_slice %291 {offsets = [0, 32], sizes = [2, 32], strides = [1, 1]} : vector<2x128xf32> to vector<2x32xf32>
    %295 = vector.extract_strided_slice %292 {offsets = [0, 64], sizes = [2, 32], strides = [1, 1]} : vector<2x128xf32> to vector<2x32xf32>
    %296 = vector.extract_strided_slice %291 {offsets = [0, 96], sizes = [2, 32], strides = [1, 1]} : vector<2x128xf32> to vector<2x32xf32>
    %297 = arith.mulf %294, %258 : vector<2x32xf32>
    %298 = arith.mulf %293, %295 : vector<2x32xf32>
    %299 = arith.addf %297, %298 : vector<2x32xf32>
    %300 = math.tanh %299 : vector<2x32xf32>
    %301 = arith.mulf %296, %300 : vector<2x32xf32>
    %302 = arith.negf %286 : vector<2x128xf32>
    %303 = math.exp %302 : vector<2x128xf32>
    %cst_68 = arith.constant 1.000000e+00 : f32
    %304 = vector.broadcast %cst_68 : f32 to vector<2x128xf32>
    %305 = arith.addf %304, %303 : vector<2x128xf32>
    %306 = arith.divf %304, %305 : vector<2x128xf32>
    %307 = math.tanh %286 : vector<2x128xf32>
    %308 = vector.extract_strided_slice %306 {offsets = [0, 0], sizes = [2, 32], strides = [1, 1]} : vector<2x128xf32> to vector<2x32xf32>
    %309 = vector.extract_strided_slice %306 {offsets = [0, 32], sizes = [2, 32], strides = [1, 1]} : vector<2x128xf32> to vector<2x32xf32>
    %310 = vector.extract_strided_slice %307 {offsets = [0, 64], sizes = [2, 32], strides = [1, 1]} : vector<2x128xf32> to vector<2x32xf32>
    %311 = vector.extract_strided_slice %306 {offsets = [0, 96], sizes = [2, 32], strides = [1, 1]} : vector<2x128xf32> to vector<2x32xf32>
    %312 = arith.mulf %309, %273 : vector<2x32xf32>
    %313 = arith.mulf %308, %310 : vector<2x32xf32>
    %314 = arith.addf %312, %313 : vector<2x32xf32>
    %315 = math.tanh %314 : vector<2x32xf32>
    %316 = arith.mulf %311, %315 : vector<2x32xf32>
    %317 = tpu.concatenate %301, %316 in 1 : vector<2x32xf32>, vector<2x32xf32> -> vector<2x64xf32>
    %318 = arith.truncf %317 : vector<2x64xf32> to vector<2x64xbf16>
    %c0_69 = arith.constant 0 : index
    %c0_70 = arith.constant 0 : index
    %319 = vector.load %arg4[%c0_69, %c0_70] : memref<64x128xbf16, #tpu.memory_space<vmem>>, vector<64x128xbf16>
    %cst_71 = arith.constant dense<0.000000e+00> : vector<2x128xf32>
    %320 = tpu.matmul %318, %319, %cst_71 {dimension_numbers = #tpu.dot_dimension_numbers<[1], [0], [0], [1], [0, 0, 1, 1], [], []>} : vector<2x64xbf16>, vector<64x128xbf16>, vector<2x128xf32> -> vector<2x128xf32>
    %c0_72 = arith.constant 0 : index
    %c0_73 = arith.constant 0 : index
    %321 = vector.load %arg5[%c0_72, %c0_73] : memref<1x128xf32, #tpu.memory_space<vmem>>, vector<1x128xf32>
    %322 = vector.broadcast %321 : vector<1x128xf32> to vector<2x128xf32>
    %323 = arith.addf %320, %322 : vector<2x128xf32>
    %324 = arith.negf %323 : vector<2x128xf32>
    %325 = math.exp %324 : vector<2x128xf32>
    %cst_74 = arith.constant 1.000000e+00 : f32
    %326 = vector.broadcast %cst_74 : f32 to vector<2x128xf32>
    %327 = arith.addf %326, %325 : vector<2x128xf32>
    %328 = arith.divf %326, %327 : vector<2x128xf32>
    %329 = math.tanh %323 : vector<2x128xf32>
    %330 = vector.extract_strided_slice %328 {offsets = [0, 0], sizes = [2, 32], strides = [1, 1]} : vector<2x128xf32> to vector<2x32xf32>
    %331 = vector.extract_strided_slice %328 {offsets = [0, 32], sizes = [2, 32], strides = [1, 1]} : vector<2x128xf32> to vector<2x32xf32>
    %332 = vector.extract_strided_slice %329 {offsets = [0, 64], sizes = [2, 32], strides = [1, 1]} : vector<2x128xf32> to vector<2x32xf32>
    %333 = vector.extract_strided_slice %328 {offsets = [0, 96], sizes = [2, 32], strides = [1, 1]} : vector<2x128xf32> to vector<2x32xf32>
    %334 = arith.mulf %331, %314 : vector<2x32xf32>
    %335 = arith.mulf %330, %332 : vector<2x32xf32>
    %336 = arith.addf %334, %335 : vector<2x32xf32>
    %337 = math.tanh %336 : vector<2x32xf32>
    %338 = arith.mulf %333, %337 : vector<2x32xf32>
    %c0_75 = arith.constant 0 : index
    %c0_76 = arith.constant 0 : index
    %339 = vector.load %arg6[%c0_75, %c0_76] : memref<1x32xf32, #tpu.memory_space<vmem>>, vector<1x32xf32>
    %340 = vector.broadcast %339 : vector<1x32xf32> to vector<2x32xf32>
    %341 = arith.mulf %338, %340 : vector<2x32xf32>
    %cst_77 = arith.constant dense<0.000000e+00> : vector<2xf32>
    %342 = vector.multi_reduction <add>, %341, %cst_77 [1] : vector<2x32xf32> to vector<2xf32>
    %343 = vector.shape_cast %342 : vector<2xf32> to vector<2x1xf32>
    %c0_78 = arith.constant 0 : index
    %c0_79 = arith.constant 0 : index
    %344 = vector.load %arg7[%c0_78, %c0_79] : memref<1x1xf32, #tpu.memory_space<vmem>>, vector<1x1xf32>
    %345 = vector.broadcast %344 : vector<1x1xf32> to vector<2x1xf32>
    %346 = arith.addf %343, %345 : vector<2x1xf32>
    %c0_80 = arith.constant 0 : index
    %c0_81 = arith.constant 0 : index
    %347 = vector.load %arg8[%c0_80, %c0_81] : memref<2x1xf32, #tpu.memory_space<vmem>>, vector<2x1xf32>
    tpu.vector_store %arg8[%c0_80, %c0_81], %346 {strides = array<i32>} : memref<2x1xf32, #tpu.memory_space<vmem>>, vector<2x1xf32>,
    return
  }
}

</mosaic_0001>

<llo_original>
// kernel: lstm_model_forward.1
$region0: #{lstm_model_forward.1}
  #allocation0 [shape = 'u32[]', space=smem, size = 0x4, offset = 0x4, fixed_abs, tag = 'smem constant byte address 0x4 - core index']
  #allocation1 [shape = 'u32[144,128]{1,0:T(1,128)}', space=vmem, size = 0x12000, scoped, tag = 'internal scratch']
  #allocation2 [shape = 'f32[1,1]{1,0:T(1,128)S(1)}', space=vmem, size = 0x200, scoped, tag = 'scoped memory for lstm_model_forward.1']
  %s0 = inlined_call_operand.vmem [shape: bf16[16,4], index: 0, kind: input, shape index: {}]
  %s1 = inlined_call_operand.vmem [shape: bf16[4,128], index: 1, kind: input, shape index: {}]
  %s2 = inlined_call_operand.vmem [shape: bf16[32,128], index: 2, kind: input, shape index: {}]
  %s3 = inlined_call_operand.vmem [shape: f32[1,128], index: 3, kind: input, shape index: {}]
  %s4 = inlined_call_operand.vmem [shape: bf16[64,128], index: 4, kind: input, shape index: {}]
  %s5 = inlined_call_operand.vmem [shape: f32[1,128], index: 5, kind: input, shape index: {}]
  %s6 = inlined_call_operand.vmem [shape: f32[1,32], index: 6, kind: input, shape index: {}]
  %s7 = inlined_call_operand.<no memory space> [shape: f32[1,1], index: 7, kind: input, shape index: {}]
  %s8 = inlined_call_operand.vmem [shape: f32[2,1], index: 8, kind: output, shape index: {}]
  %s9 = sld [smem:[#allocation0]]
  $region42: #{lstm_model_forward.1} parent=0
    _
  %s11 = ssub.s32 1, %s9
  %s12 = scalar_select 0, %s11, %s9
  %v13 = vstv %s7
  %14 = vst [vmem:[#allocation2] sm:$0x1] %v13
  // Predicated region
  $region2: #{lstm_model_forward.1} parent=0 // pred_check
    _
  $region3: #{lstm_model_forward.1} parent=0 // pred_check_branch
    %16 = sbr.rel (0) target = $region5
  $region4: #{lstm_model_forward.1} parent=0 // pred_region
    _
  $region5: #{lstm_model_forward.1} parent=0 // pred_fallthru
    _
  // Predicated region
  $region6: #{lstm_model_forward.1} parent=0 // pred_check
    _
  $region7: #{lstm_model_forward.1} parent=0 // pred_check_branch
    %18 = sbr.rel (0) target = $region9
  $region8: #{lstm_model_forward.1} parent=0 // pred_region
    _
  $region9: #{lstm_model_forward.1} parent=0 // pred_fallthru
    _
  // Predicated region
  $region10: #{lstm_model_forward.1} parent=0 // pred_check
    _
  $region11: #{lstm_model_forward.1} parent=0 // pred_check_branch
    %20 = sbr.rel (0) target = $region13
  $region12: #{lstm_model_forward.1} parent=0 // pred_region
    _
  $region13: #{lstm_model_forward.1} parent=0 // pred_fallthru
    _
  // Predicated region
  $region14: #{lstm_model_forward.1} parent=0 // pred_check
    _
  $region15: #{lstm_model_forward.1} parent=0 // pred_check_branch
    %22 = sbr.rel (0) target = $region17
  $region16: #{lstm_model_forward.1} parent=0 // pred_region
    _
  $region17: #{lstm_model_forward.1} parent=0 // pred_fallthru
    _
  // Predicated region
  $region18: #{lstm_model_forward.1} parent=0 // pred_check
    _
  $region19: #{lstm_model_forward.1} parent=0 // pred_check_branch
    %24 = sbr.rel (0) target = $region21
  $region20: #{lstm_model_forward.1} parent=0 // pred_region
    _
  $region21: #{lstm_model_forward.1} parent=0 // pred_fallthru
    _
  // Predicated region
  $region22: #{lstm_model_forward.1} parent=0 // pred_check
    _
  $region23: #{lstm_model_forward.1} parent=0 // pred_check_branch
    %26 = sbr.rel (0) target = $region25
  $region24: #{lstm_model_forward.1} parent=0 // pred_region
    _
  $region25: #{lstm_model_forward.1} parent=0 // pred_fallthru
    _
  // Predicated region
  $region26: #{lstm_model_forward.1} parent=0 // pred_check
    _
  $region27: #{lstm_model_forward.1} parent=0 // pred_check_branch
    %28 = sbr.rel (0) target = $region29
  $region28: #{lstm_model_forward.1} parent=0 // pred_region
    _
  $region29: #{lstm_model_forward.1} parent=0 // pred_fallthru
    _
  // Predicated region
  $region30: #{lstm_model_forward.1} parent=0 // pred_check
    _
  $region31: #{lstm_model_forward.1} parent=0 // pred_check_branch
    %30 = sbr.rel (0) target = $region33
  $region32: #{lstm_model_forward.1} parent=0 // pred_region
    _
  $region33: #{lstm_model_forward.1} parent=0 // pred_fallthru
    _
  %v32 = vld [vmem:[%s0] sm:$0xf]
  %v33 = vld [vmem:[%s0 + $0x4] sm:$0xf]
  %v34 = vld [vmem:[%s1] sm:$0x3]
  %v35 = vld [vmem:[%s3] sm:$0x1]
  %v37 = vlaneseq
  %v38 = vshrl.u32 %v37, 7
  %v39 = vsub.s32 0, %v38
  %v40 = vrot.slane %v35, %v39
  %v44 = vunpack.c.l.b16 %v32
  %v45 = vunpack.c.l.b16 %v33
  %v46 = vpack.c.b16 %v45, %v44
  %vm47 = vcmask 31744
  %v49 = vsel %vm47, %v46, 0
  %vm51 = vcmask 1041408
  %v53 = vsel %vm51, %v34, 0
  %55 = vmatprep.subr.bf16.mxu0 0
  %56 = vmatpush1.bf16.msra.mxu0 0
  %57 = vmatprep.subr.bf16.mxu0 0
  %58 = vmatpush1.bf16.msra.mxu0 0
  %59 = vmatprep.subr.bf16.mxu0 0
  %60 = vmatpush1.bf16.msra.mxu0 0
  %61 = vmatprep.subr.bf16.mxu0 0
  %62 = vmatpush1.bf16.msra.mxu0 0
  %63 = vmatprep.subr.bf16.mxu0 0
  %64 = vmatpush1.bf16.msra.mxu0 0
  %65 = vmatprep.subr.bf16.mxu0 0
  %66 = vmatpush1.bf16.msra.mxu0 0
  %67 = vmatprep.subr.bf16.mxu0 0
  %68 = vmatpush1.bf16.msra.mxu0 0
  %69 = vmatprep.subr.bf16.mxu0 0
  %70 = vmatpush1.bf16.msra.mxu0 %v53
  %71 = vmatprep.subr.bf16.mxu0 0
  %72 = vmatpush2.bf16.msra.mxu0 0
  %73 = vmatprep.subr.bf16.mxu0 0
  %74 = vmatpush2.bf16.msra.mxu0 0
  %75 = vmatprep.subr.bf16.mxu0 0
  %76 = vmatpush2.bf16.msra.mxu0 0
  %77 = vmatprep.subr.bf16.mxu0 0
  %78 = vmatpush2.bf16.msra.mxu0 0
  %79 = vmatprep.subr.bf16.mxu0 0
  %80 = vmatpush2.bf16.msra.mxu0 0
  %81 = vmatprep.subr.bf16.mxu0 0
  %82 = vmatpush2.bf16.msra.mxu0 0
  %83 = vmatprep.subr.bf16.mxu0 0
  %84 = vmatpush2.bf16.msra.mxu0 0
  %85 = vmatprep.subr.bf16.mxu0 0
  %86 = vmatpush2.bf16.msra.mxu0 0
  %87 = vmatprep.mubr.bf16.mxu0 0
  %88 = vmatmul.mubr.bf16.gmra.mxu0 %v49
  %v89 = vpop.f32.mrf.mxu0
  %v90 = vadd.f32 %v40, %v89
  %v91 = vpop.f32.mrf.mxu0
  %v92 = vpop.f32.mrf.mxu0
  %v93 = vadd.f32 %v40, %v92
  %v94 = vpop.f32.mrf.mxu0
  %95 = vdwg.mxu0
  %v96 = vld [vmem:[%s2] sm:$0xf]
  %v97 = vld [vmem:[%s2 + $0x4] sm:$0xf]
  %v98 = vld [vmem:[%s2 + $0x8] sm:$0xf]
  %v99 = vld [vmem:[%s2 + $0xc] sm:$0xf]
  %v104 = vunpack.c.l.b16 %v96
  %v105 = vunpack.c.l.b16 %v97
  %v106 = vunpack.c.l.b16 %v98
  %v107 = vunpack.c.l.b16 %v99
  %v108 = vpack.c.b16 %v105, %v104
  %v109 = vpack.c.b16 %v107, %v106
  %vm112 = vcmask 261120
  %v114 = vsel %vm112, 0, 0
  %116 = vmatprep.subr.bf16.mxu0 0
  %117 = vmatpush1.bf16.msra.mxu0 0
  %118 = vmatprep.subr.bf16.mxu0 0
  %119 = vmatpush1.bf16.msra.mxu0 0
  %120 = vmatprep.subr.bf16.mxu0 0
  %121 = vmatpush1.bf16.msra.mxu0 0
  %122 = vmatprep.subr.bf16.mxu0 0
  %123 = vmatpush1.bf16.msra.mxu0 0
  %124 = vmatprep.subr.bf16.mxu0 0
  %125 = vmatpush1.bf16.msra.mxu0 0
  %126 = vmatprep.subr.bf16.mxu0 0
  %127 = vmatpush1.bf16.msra.mxu0 0
  %128 = vmatprep.subr.bf16.mxu0 0
  %129 = vmatpush1.bf16.msra.mxu0 %v109
  %130 = vmatprep.subr.bf16.mxu0 0
  %131 = vmatpush1.bf16.msra.mxu0 %v108
  %132 = vmatprep.subr.bf16.mxu0 0
  %133 = vmatpush2.bf16.msra.mxu0 0
  %134 = vmatprep.subr.bf16.mxu0 0
  %135 = vmatpush2.bf16.msra.mxu0 0
  %136 = vmatprep.subr.bf16.mxu0 0
  %137 = vmatpush2.bf16.msra.mxu0 0
  %138 = vmatprep.subr.bf16.mxu0 0
  %139 = vmatpush2.bf16.msra.mxu0 0
  %140 = vmatprep.subr.bf16.mxu0 0
  %141 = vmatpush2.bf16.msra.mxu0 0
  %142 = vmatprep.subr.bf16.mxu0 0
  %143 = vmatpush2.bf16.msra.mxu0 0
  %144 = vmatprep.subr.bf16.mxu0 0
  %145 = vmatpush2.bf16.msra.mxu0 0
  %146 = vmatprep.subr.bf16.mxu0 0
  %147 = vmatpush2.bf16.msra.mxu0 0
  %148 = vmatprep.mubr.bf16.mxu0 0
  %149 = vmatmul.mubr.bf16.gmra.mxu0 %v114
  %v150 = vpop.f32.mrf.mxu0
  %v151 = vadd.f32 0.0, %v150
  %v152 = vpop.f32.mrf.mxu0
  %v153 = vpop.f32.mrf.mxu0
  %v154 = vpop.f32.mrf.mxu0
  %155 = vdwg.mxu0
  %v156 = vadd.f32 %v90, %v151
  %v157 = vxor.u32 %v156, 2147483648
  %v158 = vmul.f32 %v157, 1.442695
  %v159 = vpow.pop %v158
  %v160 = vadd.f32 %v159, 1.0
  %v161 = vrcp.pop %v160
  %v162 = vmul.f32 1.0, %v161
  %v163 = vtanh.pop %v156
  %v164 = vmul.f32 %v162, 0.0
  %166 = vrot.lane.b32.xlu0 %v163, 64
  %v167 = vpop.permute.xlu0 %166
  %v169 = vmul.f32 %v162, %v167
  %171 = vrot.lane.b32.xlu0 %v169, 32
  %v172 = vpop.permute.xlu0 %171
  %v174 = vadd.f32 %v164, %v172
  %v175 = vtanh.pop %v174
  %177 = vrot.lane.b32.xlu0 %v175, 64
  %v178 = vpop.permute.xlu0 %177
  %v180 = vmul.f32 %v162, %v178
  %v181 = vpack.c.bf16 %v180, %v180
  %183 = vrot.lane.b32.xlu0 %v181, 32
  %v184 = vpop.permute.xlu0 %183
  %v186 = vsel %vm112, %v184, 0
  %188 = vmatprep.subr.bf16.mxu0 0
  %189 = vmatpush1.bf16.msra.mxu0 0
  %190 = vmatprep.subr.bf16.mxu0 0
  %191 = vmatpush1.bf16.msra.mxu0 0
  %192 = vmatprep.subr.bf16.mxu0 0
  %193 = vmatpush1.bf16.msra.mxu0 0
  %194 = vmatprep.subr.bf16.mxu0 0
  %195 = vmatpush1.bf16.msra.mxu0 0
  %196 = vmatprep.subr.bf16.mxu0 0
  %197 = vmatpush1.bf16.msra.mxu0 0
  %198 = vmatprep.subr.bf16.mxu0 0
  %199 = vmatpush1.bf16.msra.mxu0 0
  %200 = vmatprep.subr.bf16.mxu0 0
  %201 = vmatpush1.bf16.msra.mxu0 %v109
  %202 = vmatprep.subr.bf16.mxu0 0
  %203 = vmatpush1.bf16.msra.mxu0 %v108
  %204 = vmatprep.subr.bf16.mxu0 0
  %205 = vmatpush2.bf16.msra.mxu0 0
  %206 = vmatprep.subr.bf16.mxu0 0
  %207 = vmatpush2.bf16.msra.mxu0 0
  %208 = vmatprep.subr.bf16.mxu0 0
  %209 = vmatpush2.bf16.msra.mxu0 0
  %210 = vmatprep.subr.bf16.mxu0 0
  %211 = vmatpush2.bf16.msra.mxu0 0
  %212 = vmatprep.subr.bf16.mxu0 0
  %213 = vmatpush2.bf16.msra.mxu0 0
  %214 = vmatprep.subr.bf16.mxu0 0
  %215 = vmatpush2.bf16.msra.mxu0 0
  %216 = vmatprep.subr.bf16.mxu0 0
  %217 = vmatpush2.bf16.msra.mxu0 0
  %218 = vmatprep.subr.bf16.mxu0 0
  %219 = vmatpush2.bf16.msra.mxu0 0
  %220 = vmatprep.mubr.bf16.mxu0 0
  %221 = vmatmul.mubr.bf16.gmra.mxu0 %v186
  %v222 = vpop.f32.mrf.mxu0
  %v223 = vadd.f32 0.0, %v222
  %v224 = vpop.f32.mrf.mxu0
  %v225 = vpop.f32.mrf.mxu0
  %v226 = vpop.f32.mrf.mxu0
  %227 = vdwg.mxu0
  %v229 = vrot.slane %v223, 6
  %v231 = vadd.f32 %v90, %v229
  %233 = vrot.lane.b32.xlu0 %v180, 32
  %v234 = vpop.permute.xlu0 %233
  %v236 = vsel %vm112, %v234, 0.0
  %v237 = vpack.c.bf16 %v236, %v236
  %v238 = vld [vmem:[%s4] sm:$0xf]
  %v239 = vld [vmem:[%s4 + $0x4] sm:$0xf]
  %v240 = vld [vmem:[%s4 + $0x8] sm:$0xf]
  %v241 = vld [vmem:[%s4 + $0xc] sm:$0xf]
  %v242 = vld [vmem:[%s4 + $0x10] sm:$0xf]
  %v243 = vld [vmem:[%s4 + $0x14] sm:$0xf]
  %v244 = vld [vmem:[%s4 + $0x18] sm:$0xf]
  %v245 = vld [vmem:[%s4 + $0x1c] sm:$0xf]
  %v246 = vld [vmem:[%s5] sm:$0x1]
  %v248 = vlaneseq
  %v249 = vshrl.u32 %v248, 7
  %v250 = vsub.s32 0, %v249
  %v251 = vrot.slane %v246, %v250
  %v261 = vunpack.c.l.b16 %v238
  %v262 = vunpack.c.l.b16 %v239
  %v263 = vunpack.c.l.b16 %v240
  %v264 = vunpack.c.l.b16 %v241
  %v265 = vunpack.c.l.b16 %v242
  %v266 = vunpack.c.l.b16 %v243
  %v267 = vunpack.c.l.b16 %v244
  %v268 = vunpack.c.l.b16 %v245
  %v269 = vpack.c.b16 %v262, %v261
  %v270 = vpack.c.b16 %v264, %v263
  %v271 = vpack.c.b16 %v266, %v265
  %v272 = vpack.c.b16 %v268, %v267
  %vm277 = vcmask 523264
  %v279 = vsel %vm277, %v237, 0
  %281 = vmatprep.subr.bf16.mxu0 0
  %282 = vmatpush1.bf16.msra.mxu0 0
  %283 = vmatprep.subr.bf16.mxu0 0
  %284 = vmatpush1.bf16.msra.mxu0 0
  %285 = vmatprep.subr.bf16.mxu0 0
  %286 = vmatpush1.bf16.msra.mxu0 0
  %287 = vmatprep.subr.bf16.mxu0 0
  %288 = vmatpush1.bf16.msra.mxu0 0
  %289 = vmatprep.subr.bf16.mxu0 0
  %290 = vmatpush1.bf16.msra.mxu0 %v272
  %291 = vmatprep.subr.bf16.mxu0 0
  %292 = vmatpush1.bf16.msra.mxu0 %v271
  %293 = vmatprep.subr.bf16.mxu0 0
  %294 = vmatpush1.bf16.msra.mxu0 %v270
  %295 = vmatprep.subr.bf16.mxu0 0
  %296 = vmatpush1.bf16.msra.mxu0 %v269
  %297 = vmatprep.subr.bf16.mxu0 0
  %298 = vmatpush2.bf16.msra.mxu0 0
  %299 = vmatprep.subr.bf16.mxu0 0
  %300 = vmatpush2.bf16.msra.mxu0 0
  %301 = vmatprep.subr.bf16.mxu0 0
  %302 = vmatpush2.bf16.msra.mxu0 0
  %303 = vmatprep.subr.bf16.mxu0 0
  %304 = vmatpush2.bf16.msra.mxu0 0
  %305 = vmatprep.subr.bf16.mxu0 0
  %306 = vmatpush2.bf16.msra.mxu0 0
  %307 = vmatprep.subr.bf16.mxu0 0
  %308 = vmatpush2.bf16.msra.mxu0 0
  %309 = vmatprep.subr.bf16.mxu0 0
  %310 = vmatpush2.bf16.msra.mxu0 0
  %311 = vmatprep.subr.bf16.mxu0 0
  %312 = vmatpush2.bf16.msra.mxu0 0
  %313 = vmatprep.mubr.bf16.mxu0 0
  %314 = vmatmul.mubr.bf16.gmra.mxu0 %v279
  %v315 = vpop.f32.mrf.mxu0
  %v316 = vadd.f32 %v251, %v315
  %v317 = vpop.f32.mrf.mxu0
  %v318 = vpop.f32.mrf.mxu0
  %v319 = vpop.f32.mrf.mxu0
  %320 = vdwg.mxu0
  %v321 = vxor.u32 %v231, 2147483648
  %v322 = vmul.f32 %v321, 1.442695
  %v323 = vpow.pop %v322
  %v324 = vadd.f32 %v323, 1.0
  %v325 = vrcp.pop %v324
  %v326 = vmul.f32 1.0, %v325
  %v327 = vtanh.pop %v231
  %v329 = vrot.slane %v174, 6
  %v331 = vmul.f32 %v326, %v329
  %333 = vrot.lane.b32.xlu0 %v327, 64
  %v334 = vpop.permute.xlu0 %333
  %v336 = vmul.f32 %v326, %v334
  %338 = vrot.lane.b32.xlu0 %v336, 32
  %v339 = vpop.permute.xlu0 %338
  %v341 = vadd.f32 %v331, %v339
  %v342 = vtanh.pop %v341
  %344 = vrot.lane.b32.xlu0 %v342, 64
  %v345 = vpop.permute.xlu0 %344
  %v347 = vmul.f32 %v326, %v345
  %v348 = vxor.u32 %v316, 2147483648
  %v349 = vmul.f32 %v348, 1.442695
  %v350 = vpow.pop %v349
  %v351 = vadd.f32 %v350, 1.0
  %v352 = vrcp.pop %v351
  %v353 = vmul.f32 1.0, %v352
  %v354 = vtanh.pop %v316
  %v355 = vmul.f32 %v353, 0.0
  %357 = vrot.lane.b32.xlu0 %v354, 64
  %v358 = vpop.permute.xlu0 %357
  %v360 = vmul.f32 %v353, %v358
  %362 = vrot.lane.b32.xlu0 %v360, 32
  %v363 = vpop.permute.xlu0 %362
  %v365 = vadd.f32 %v355, %v363
  %v366 = vtanh.pop %v365
  %368 = vrot.lane.b32.xlu0 %v366, 64
  %v369 = vpop.permute.xlu0 %368
  %v371 = vmul.f32 %v353, %v369
  %v372 = vpack.c.bf16 %v347, %v347
  %v374 = vrot.slane %v372, 1
  %375 = vrot.lane.b32.xlu0 %v374, 32
  %v376 = vpop.permute.xlu0 %375
  %v378 = vsel %vm112, %v376, 0
  %380 = vmatprep.subr.bf16.mxu0 0
  %381 = vmatpush1.bf16.msra.mxu0 0
  %382 = vmatprep.subr.bf16.mxu0 0
  %383 = vmatpush1.bf16.msra.mxu0 0
  %384 = vmatprep.subr.bf16.mxu0 0
  %385 = vmatpush1.bf16.msra.mxu0 0
  %386 = vmatprep.subr.bf16.mxu0 0
  %387 = vmatpush1.bf16.msra.mxu0 0
  %388 = vmatprep.subr.bf16.mxu0 0
  %389 = vmatpush1.bf16.msra.mxu0 0
  %390 = vmatprep.subr.bf16.mxu0 0
  %391 = vmatpush1.bf16.msra.mxu0 0
  %392 = vmatprep.subr.bf16.mxu0 0
  %393 = vmatpush1.bf16.msra.mxu0 %v109
  %394 = vmatprep.subr.bf16.mxu0 0
  %395 = vmatpush1.bf16.msra.mxu0 %v108
  %396 = vmatprep.subr.bf16.mxu0 0
  %397 = vmatpush2.bf16.msra.mxu0 0
  %398 = vmatprep.subr.bf16.mxu0 0
  %399 = vmatpush2.bf16.msra.mxu0 0
  %400 = vmatprep.subr.bf16.mxu0 0
  %401 = vmatpush2.bf16.msra.mxu0 0
  %402 = vmatprep.subr.bf16.mxu0 0
  %403 = vmatpush2.bf16.msra.mxu0 0
  %404 = vmatprep.subr.bf16.mxu0 0
  %405 = vmatpush2.bf16.msra.mxu0 0
  %406 = vmatprep.subr.bf16.mxu0 0
  %407 = vmatpush2.bf16.msra.mxu0 0
  %408 = vmatprep.subr.bf16.mxu0 0
  %409 = vmatpush2.bf16.msra.mxu0 0
  %410 = vmatprep.subr.bf16.mxu0 0
  %411 = vmatpush2.bf16.msra.mxu0 0
  %412 = vmatprep.mubr.bf16.mxu0 0
  %413 = vmatmul.mubr.bf16.gmra.mxu0 %v378
  %v414 = vpop.f32.mrf.mxu0
  %v415 = vadd.f32 0.0, %v414
  %v416 = vpop.f32.mrf.mxu0
  %v417 = vpop.f32.mrf.mxu0
  %v418 = vpop.f32.mrf.mxu0
  %419 = vdwg.mxu0
  %v421 = vrot.slane %v415, 4
  %v423 = vadd.f32 %v90, %v421
  %425 = vrot.lane.b32.xlu0 %v347, 32
  %v426 = vpop.permute.xlu0 %425
  %v429 = vrot.slane %v371, 6
  %430 = vrot.lane.b32.xlu0 %v429, 64
  %v431 = vpop.permute.xlu0 %430
  %v433 = vsel %vm112, %v426, %v431
  %v434 = vpack.c.bf16 %v433, %v433
  %v436 = vrot.slane %v434, 1
  %v438 = vsel %vm277, %v436, 0
  %440 = vmatprep.subr.bf16.mxu0 0
  %441 = vmatpush1.bf16.msra.mxu0 0
  %442 = vmatprep.subr.bf16.mxu0 0
  %443 = vmatpush1.bf16.msra.mxu0 0
  %444 = vmatprep.subr.bf16.mxu0 0
  %445 = vmatpush1.bf16.msra.mxu0 0
  %446 = vmatprep.subr.bf16.mxu0 0
  %447 = vmatpush1.bf16.msra.mxu0 0
  %448 = vmatprep.subr.bf16.mxu0 0
  %449 = vmatpush1.bf16.msra.mxu0 %v272
  %450 = vmatprep.subr.bf16.mxu0 0
  %451 = vmatpush1.bf16.msra.mxu0 %v271
  %452 = vmatprep.subr.bf16.mxu0 0
  %453 = vmatpush1.bf16.msra.mxu0 %v270
  %454 = vmatprep.subr.bf16.mxu0 0
  %455 = vmatpush1.bf16.msra.mxu0 %v269
  %456 = vmatprep.subr.bf16.mxu0 0
  %457 = vmatpush2.bf16.msra.mxu0 0
  %458 = vmatprep.subr.bf16.mxu0 0
  %459 = vmatpush2.bf16.msra.mxu0 0
  %460 = vmatprep.subr.bf16.mxu0 0
  %461 = vmatpush2.bf16.msra.mxu0 0
  %462 = vmatprep.subr.bf16.mxu0 0
  %463 = vmatpush2.bf16.msra.mxu0 0
  %464 = vmatprep.subr.bf16.mxu0 0
  %465 = vmatpush2.bf16.msra.mxu0 0
  %466 = vmatprep.subr.bf16.mxu0 0
  %467 = vmatpush2.bf16.msra.mxu0 0
  %468 = vmatprep.subr.bf16.mxu0 0
  %469 = vmatpush2.bf16.msra.mxu0 0
  %470 = vmatprep.subr.bf16.mxu0 0
  %471 = vmatpush2.bf16.msra.mxu0 0
  %472 = vmatprep.mubr.bf16.mxu0 0
  %473 = vmatmul.mubr.bf16.gmra.mxu0 %v438
  %v474 = vpop.f32.mrf.mxu0
  %v475 = vadd.f32 %v251, %v474
  %v476 = vpop.f32.mrf.mxu0
  %v477 = vpop.f32.mrf.mxu0
  %v478 = vpop.f32.mrf.mxu0
  %479 = vdwg.mxu0
  %v480 = vxor.u32 %v423, 2147483648
  %v481 = vmul.f32 %v480, 1.442695
  %v482 = vpow.pop %v481
  %v483 = vadd.f32 %v482, 1.0
  %v484 = vrcp.pop %v483
  %v485 = vmul.f32 1.0, %v484
  %v486 = vtanh.pop %v423
  %v488 = vrot.slane %v341, 6
  %v490 = vmul.f32 %v485, %v488
  %492 = vrot.lane.b32.xlu0 %v486, 64
  %v493 = vpop.permute.xlu0 %492
  %v495 = vmul.f32 %v485, %v493
  %497 = vrot.lane.b32.xlu0 %v495, 32
  %v498 = vpop.permute.xlu0 %497
  %v500 = vadd.f32 %v490, %v498
  %v501 = vtanh.pop %v500
  %503 = vrot.lane.b32.xlu0 %v501, 64
  %v504 = vpop.permute.xlu0 %503
  %v506 = vmul.f32 %v485, %v504
  %v507 = vxor.u32 %v475, 2147483648
  %v508 = vmul.f32 %v507, 1.442695
  %v509 = vpow.pop %v508
  %v510 = vadd.f32 %v509, 1.0
  %v511 = vrcp.pop %v510
  %v512 = vmul.f32 1.0, %v511
  %v513 = vtanh.pop %v475
  %v514 = vmul.f32 %v512, %v365
  %516 = vrot.lane.b32.xlu0 %v513, 64
  %v517 = vpop.permute.xlu0 %516
  %v519 = vmul.f32 %v512, %v517
  %521 = vrot.lane.b32.xlu0 %v519, 32
  %v522 = vpop.permute.xlu0 %521
  %v524 = vadd.f32 %v514, %v522
  %v525 = vtanh.pop %v524
  %527 = vrot.lane.b32.xlu0 %v525, 64
  %v528 = vpop.permute.xlu0 %527
  %v530 = vmul.f32 %v512, %v528
  %v531 = vpack.c.bf16 %v506, %v506
  %v533 = vrot.slane %v531, 2
  %534 = vrot.lane.b32.xlu0 %v533, 32
  %v535 = vpop.permute.xlu0 %534
  %v537 = vsel %vm112, %v535, 0
  %539 = vmatprep.subr.bf16.mxu0 0
  %540 = vmatpush1.bf16.msra.mxu0 0
  %541 = vmatprep.subr.bf16.mxu0 0
  %542 = vmatpush1.bf16.msra.mxu0 0
  %543 = vmatprep.subr.bf16.mxu0 0
  %544 = vmatpush1.bf16.msra.mxu0 0
  %545 = vmatprep.subr.bf16.mxu0 0
  %546 = vmatpush1.bf16.msra.mxu0 0
  %547 = vmatprep.subr.bf16.mxu0 0
  %548 = vmatpush1.bf16.msra.mxu0 0
  %549 = vmatprep.subr.bf16.mxu0 0
  %550 = vmatpush1.bf16.msra.mxu0 0
  %551 = vmatprep.subr.bf16.mxu0 0
  %552 = vmatpush1.bf16.msra.mxu0 %v109
  %553 = vmatprep.subr.bf16.mxu0 0
  %554 = vmatpush1.bf16.msra.mxu0 %v108
  %555 = vmatprep.subr.bf16.mxu0 0
  %556 = vmatpush2.bf16.msra.mxu0 0
  %557 = vmatprep.subr.bf16.mxu0 0
  %558 = vmatpush2.bf16.msra.mxu0 0
  %559 = vmatprep.subr.bf16.mxu0 0
  %560 = vmatpush2.bf16.msra.mxu0 0
  %561 = vmatprep.subr.bf16.mxu0 0
  %562 = vmatpush2.bf16.msra.mxu0 0
  %563 = vmatprep.subr.bf16.mxu0 0
  %564 = vmatpush2.bf16.msra.mxu0 0
  %565 = vmatprep.subr.bf16.mxu0 0
  %566 = vmatpush2.bf16.msra.mxu0 0
  %567 = vmatprep.subr.bf16.mxu0 0
  %568 = vmatpush2.bf16.msra.mxu0 0
  %569 = vmatprep.subr.bf16.mxu0 0
  %570 = vmatpush2.bf16.msra.mxu0 0
  %571 = vmatprep.mubr.bf16.mxu0 0
  %572 = vmatmul.mubr.bf16.gmra.mxu0 %v537
  %v573 = vpop.f32.mrf.mxu0
  %v574 = vadd.f32 0.0, %v573
  %v575 = vpop.f32.mrf.mxu0
  %v576 = vpop.f32.mrf.mxu0
  %v577 = vpop.f32.mrf.mxu0
  %578 = vdwg.mxu0
  %v580 = vrot.slane %v574, 2
  %v582 = vadd.f32 %v90, %v580
  %584 = vrot.lane.b32.xlu0 %v506, 32
  %v585 = vpop.permute.xlu0 %584
  %v588 = vrot.slane %v530, 4
  %589 = vrot.lane.b32.xlu0 %v588, 64
  %v590 = vpop.permute.xlu0 %589
  %v592 = vsel %vm112, %v585, %v590
  %v593 = vpack.c.bf16 %v592, %v592
  %v595 = vrot.slane %v593, 2
  %v597 = vsel %vm277, %v595, 0
  %599 = vmatprep.subr.bf16.mxu0 0
  %600 = vmatpush1.bf16.msra.mxu0 0
  %601 = vmatprep.subr.bf16.mxu0 0
  %602 = vmatpush1.bf16.msra.mxu0 0
  %603 = vmatprep.subr.bf16.mxu0 0
  %604 = vmatpush1.bf16.msra.mxu0 0
  %605 = vmatprep.subr.bf16.mxu0 0
  %606 = vmatpush1.bf16.msra.mxu0 0
  %607 = vmatprep.subr.bf16.mxu0 0
  %608 = vmatpush1.bf16.msra.mxu0 %v272
  %609 = vmatprep.subr.bf16.mxu0 0
  %610 = vmatpush1.bf16.msra.mxu0 %v271
  %611 = vmatprep.subr.bf16.mxu0 0
  %612 = vmatpush1.bf16.msra.mxu0 %v270
  %613 = vmatprep.subr.bf16.mxu0 0
  %614 = vmatpush1.bf16.msra.mxu0 %v269
  %615 = vmatprep.subr.bf16.mxu0 0
  %616 = vmatpush2.bf16.msra.mxu0 0
  %617 = vmatprep.subr.bf16.mxu0 0
  %618 = vmatpush2.bf16.msra.mxu0 0
  %619 = vmatprep.subr.bf16.mxu0 0
  %620 = vmatpush2.bf16.msra.mxu0 0
  %621 = vmatprep.subr.bf16.mxu0 0
  %622 = vmatpush2.bf16.msra.mxu0 0
  %623 = vmatprep.subr.bf16.mxu0 0
  %624 = vmatpush2.bf16.msra.mxu0 0
  %625 = vmatprep.subr.bf16.mxu0 0
  %626 = vmatpush2.bf16.msra.mxu0 0
  %627 = vmatprep.subr.bf16.mxu0 0
  %628 = vmatpush2.bf16.msra.mxu0 0
  %629 = vmatprep.subr.bf16.mxu0 0
  %630 = vmatpush2.bf16.msra.mxu0 0
  %631 = vmatprep.mubr.bf16.mxu0 0
  %632 = vmatmul.mubr.bf16.gmra.mxu0 %v597
  %v633 = vpop.f32.mrf.mxu0
  %v634 = vadd.f32 %v251, %v633
  %v635 = vpop.f32.mrf.mxu0
  %v636 = vpop.f32.mrf.mxu0
  %v637 = vpop.f32.mrf.mxu0
  %638 = vdwg.mxu0
  %v639 = vxor.u32 %v582, 2147483648
  %v640 = vmul.f32 %v639, 1.442695
  %v641 = vpow.pop %v640
  %v642 = vadd.f32 %v641, 1.0
  %v643 = vrcp.pop %v642
  %v644 = vmul.f32 1.0, %v643
  %v645 = vtanh.pop %v582
  %v647 = vrot.slane %v500, 6
  %v649 = vmul.f32 %v644, %v647
  %651 = vrot.lane.b32.xlu0 %v645, 64
  %v652 = vpop.permute.xlu0 %651
  %v654 = vmul.f32 %v644, %v652
  %656 = vrot.lane.b32.xlu0 %v654, 32
  %v657 = vpop.permute.xlu0 %656
  %v659 = vadd.f32 %v649, %v657
  %v660 = vtanh.pop %v659
  %662 = vrot.lane.b32.xlu0 %v660, 64
  %v663 = vpop.permute.xlu0 %662
  %v665 = vmul.f32 %v644, %v663
  %v666 = vxor.u32 %v634, 2147483648
  %v667 = vmul.f32 %v666, 1.442695
  %v668 = vpow.pop %v667
  %v669 = vadd.f32 %v668, 1.0
  %v670 = vrcp.pop %v669
  %v671 = vmul.f32 1.0, %v670
  %v672 = vtanh.pop %v634
  %v673 = vmul.f32 %v671, %v524
  %675 = vrot.lane.b32.xlu0 %v672, 64
  %v676 = vpop.permute.xlu0 %675
  %v678 = vmul.f32 %v671, %v676
  %680 = vrot.lane.b32.xlu0 %v678, 32
  %v681 = vpop.permute.xlu0 %680
  %v683 = vadd.f32 %v673, %v681
  %v684 = vtanh.pop %v683
  %686 = vrot.lane.b32.xlu0 %v684, 64
  %v687 = vpop.permute.xlu0 %686
  %v689 = vmul.f32 %v671, %v687
  %v690 = vpack.c.bf16 %v665, %v665
  %v692 = vrot.slane %v690, 3
  %693 = vrot.lane.b32.xlu0 %v692, 32
  %v694 = vpop.permute.xlu0 %693
  %v696 = vsel %vm112, %v694, 0
  %698 = vmatprep.subr.bf16.mxu0 0
  %699 = vmatpush1.bf16.msra.mxu0 0
  %700 = vmatprep.subr.bf16.mxu0 0
  %701 = vmatpush1.bf16.msra.mxu0 0
  %702 = vmatprep.subr.bf16.mxu0 0
  %703 = vmatpush1.bf16.msra.mxu0 0
  %704 = vmatprep.subr.bf16.mxu0 0
  %705 = vmatpush1.bf16.msra.mxu0 0
  %706 = vmatprep.subr.bf16.mxu0 0
  %707 = vmatpush1.bf16.msra.mxu0 0
  %708 = vmatprep.subr.bf16.mxu0 0
  %709 = vmatpush1.bf16.msra.mxu0 0
  %710 = vmatprep.subr.bf16.mxu0 0
  %711 = vmatpush1.bf16.msra.mxu0 %v109
  %712 = vmatprep.subr.bf16.mxu0 0
  %713 = vmatpush1.bf16.msra.mxu0 %v108
  %714 = vmatprep.subr.bf16.mxu0 0
  %715 = vmatpush2.bf16.msra.mxu0 0
  %716 = vmatprep.subr.bf16.mxu0 0
  %717 = vmatpush2.bf16.msra.mxu0 0
  %718 = vmatprep.subr.bf16.mxu0 0
  %719 = vmatpush2.bf16.msra.mxu0 0
  %720 = vmatprep.subr.bf16.mxu0 0
  %721 = vmatpush2.bf16.msra.mxu0 0
  %722 = vmatprep.subr.bf16.mxu0 0
  %723 = vmatpush2.bf16.msra.mxu0 0
  %724 = vmatprep.subr.bf16.mxu0 0
  %725 = vmatpush2.bf16.msra.mxu0 0
  %726 = vmatprep.subr.bf16.mxu0 0
  %727 = vmatpush2.bf16.msra.mxu0 0
  %728 = vmatprep.subr.bf16.mxu0 0
  %729 = vmatpush2.bf16.msra.mxu0 0
  %730 = vmatprep.mubr.bf16.mxu0 0
  %731 = vmatmul.mubr.bf16.gmra.mxu0 %v696
  %v732 = vpop.f32.mrf.mxu0
  %v733 = vadd.f32 0.0, %v732
  %v734 = vpop.f32.mrf.mxu0
  %v735 = vpop.f32.mrf.mxu0
  %v736 = vpop.f32.mrf.mxu0
  %737 = vdwg.mxu0
  %v738 = vadd.f32 %v93, %v733
  %740 = vrot.lane.b32.xlu0 %v665, 32
  %v741 = vpop.permute.xlu0 %740
  %v744 = vrot.slane %v689, 2
  %745 = vrot.lane.b32.xlu0 %v744, 64
  %v746 = vpop.permute.xlu0 %745
  %v748 = vsel %vm112, %v741, %v746
  %v749 = vpack.c.bf16 %v748, %v748
  %v751 = vrot.slane %v749, 3
  %v753 = vsel %vm277, %v751, 0
  %755 = vmatprep.subr.bf16.mxu0 0
  %756 = vmatpush1.bf16.msra.mxu0 0
  %757 = vmatprep.subr.bf16.mxu0 0
  %758 = vmatpush1.bf16.msra.mxu0 0
  %759 = vmatprep.subr.bf16.mxu0 0
  %760 = vmatpush1.bf16.msra.mxu0 0
  %761 = vmatprep.subr.bf16.mxu0 0
  %762 = vmatpush1.bf16.msra.mxu0 0
  %763 = vmatprep.subr.bf16.mxu0 0
  %764 = vmatpush1.bf16.msra.mxu0 %v272
  %765 = vmatprep.subr.bf16.mxu0 0
  %766 = vmatpush1.bf16.msra.mxu0 %v271
  %767 = vmatprep.subr.bf16.mxu0 0
  %768 = vmatpush1.bf16.msra.mxu0 %v270
  %769 = vmatprep.subr.bf16.mxu0 0
  %770 = vmatpush1.bf16.msra.mxu0 %v269
  %771 = vmatprep.subr.bf16.mxu0 0
  %772 = vmatpush2.bf16.msra.mxu0 0
  %773 = vmatprep.subr.bf16.mxu0 0
  %774 = vmatpush2.bf16.msra.mxu0 0
  %775 = vmatprep.subr.bf16.mxu0 0
  %776 = vmatpush2.bf16.msra.mxu0 0
  %777 = vmatprep.subr.bf16.mxu0 0
  %778 = vmatpush2.bf16.msra.mxu0 0
  %779 = vmatprep.subr.bf16.mxu0 0
  %780 = vmatpush2.bf16.msra.mxu0 0
  %781 = vmatprep.subr.bf16.mxu0 0
  %782 = vmatpush2.bf16.msra.mxu0 0
  %783 = vmatprep.subr.bf16.mxu0 0
  %784 = vmatpush2.bf16.msra.mxu0 0
  %785 = vmatprep.subr.bf16.mxu0 0
  %786 = vmatpush2.bf16.msra.mxu0 0
  %787 = vmatprep.mubr.bf16.mxu0 0
  %788 = vmatmul.mubr.bf16.gmra.mxu0 %v753
  %v789 = vpop.f32.mrf.mxu0
  %v790 = vadd.f32 %v251, %v789
  %v791 = vpop.f32.mrf.mxu0
  %v792 = vpop.f32.mrf.mxu0
  %v793 = vpop.f32.mrf.mxu0
  %794 = vdwg.mxu0
  %v795 = vxor.u32 %v738, 2147483648
  %v796 = vmul.f32 %v795, 1.442695
  %v797 = vpow.pop %v796
  %v798 = vadd.f32 %v797, 1.0
  %v799 = vrcp.pop %v798
  %v800 = vmul.f32 1.0, %v799
  %v801 = vtanh.pop %v738
  %v803 = vrot.slane %v659, 6
  %v805 = vmul.f32 %v800, %v803
  %807 = vrot.lane.b32.xlu0 %v801, 64
  %v808 = vpop.permute.xlu0 %807
  %v810 = vmul.f32 %v800, %v808
  %812 = vrot.lane.b32.xlu0 %v810, 32
  %v813 = vpop.permute.xlu0 %812
  %v815 = vadd.f32 %v805, %v813
  %v816 = vtanh.pop %v815
  %818 = vrot.lane.b32.xlu0 %v816, 64
  %v819 = vpop.permute.xlu0 %818
  %v821 = vmul.f32 %v800, %v819
  %v822 = vxor.u32 %v790, 2147483648
  %v823 = vmul.f32 %v822, 1.442695
  %v824 = vpow.pop %v823
  %v825 = vadd.f32 %v824, 1.0
  %v826 = vrcp.pop %v825
  %v827 = vmul.f32 1.0, %v826
  %v828 = vtanh.pop %v790
  %v829 = vmul.f32 %v827, %v683
  %831 = vrot.lane.b32.xlu0 %v828, 64
  %v832 = vpop.permute.xlu0 %831
  %v834 = vmul.f32 %v827, %v832
  %836 = vrot.lane.b32.xlu0 %v834, 32
  %v837 = vpop.permute.xlu0 %836
  %v839 = vadd.f32 %v829, %v837
  %v840 = vtanh.pop %v839
  %842 = vrot.lane.b32.xlu0 %v840, 64
  %v843 = vpop.permute.xlu0 %842
  %v845 = vmul.f32 %v827, %v843
  %v846 = vpack.c.bf16 %v821, %v821
  %848 = vrot.lane.b32.xlu0 %v846, 32
  %v849 = vpop.permute.xlu0 %848
  %v851 = vsel %vm112, %v849, 0
  %853 = vmatprep.subr.bf16.mxu0 0
  %854 = vmatpush1.bf16.msra.mxu0 0
  %855 = vmatprep.subr.bf16.mxu0 0
  %856 = vmatpush1.bf16.msra.mxu0 0
  %857 = vmatprep.subr.bf16.mxu0 0
  %858 = vmatpush1.bf16.msra.mxu0 0
  %859 = vmatprep.subr.bf16.mxu0 0
  %860 = vmatpush1.bf16.msra.mxu0 0
  %861 = vmatprep.subr.bf16.mxu0 0
  %862 = vmatpush1.bf16.msra.mxu0 0
  %863 = vmatprep.subr.bf16.mxu0 0
  %864 = vmatpush1.bf16.msra.mxu0 0
  %865 = vmatprep.subr.bf16.mxu0 0
  %866 = vmatpush1.bf16.msra.mxu0 %v109
  %867 = vmatprep.subr.bf16.mxu0 0
  %868 = vmatpush1.bf16.msra.mxu0 %v108
  %869 = vmatprep.subr.bf16.mxu0 0
  %870 = vmatpush2.bf16.msra.mxu0 0
  %871 = vmatprep.subr.bf16.mxu0 0
  %872 = vmatpush2.bf16.msra.mxu0 0
  %873 = vmatprep.subr.bf16.mxu0 0
  %874 = vmatpush2.bf16.msra.mxu0 0
  %875 = vmatprep.subr.bf16.mxu0 0
  %876 = vmatpush2.bf16.msra.mxu0 0
  %877 = vmatprep.subr.bf16.mxu0 0
  %878 = vmatpush2.bf16.msra.mxu0 0
  %879 = vmatprep.subr.bf16.mxu0 0
  %880 = vmatpush2.bf16.msra.mxu0 0
  %881 = vmatprep.subr.bf16.mxu0 0
  %882 = vmatpush2.bf16.msra.mxu0 0
  %883 = vmatprep.subr.bf16.mxu0 0
  %884 = vmatpush2.bf16.msra.mxu0 0
  %885 = vmatprep.mubr.bf16.mxu0 0
  %886 = vmatmul.mubr.bf16.gmra.mxu0 %v851
  %v887 = vpop.f32.mrf.mxu0
  %v888 = vadd.f32 0.0, %v887
  %v889 = vpop.f32.mrf.mxu0
  %v890 = vpop.f32.mrf.mxu0
  %v891 = vpop.f32.mrf.mxu0
  %892 = vdwg.mxu0
  %v894 = vrot.slane %v888, 6
  %v896 = vadd.f32 %v93, %v894
  %898 = vrot.lane.b32.xlu0 %v821, 32
  %v899 = vpop.permute.xlu0 %898
  %902 = vrot.lane.b32.xlu0 %v845, 64
  %v903 = vpop.permute.xlu0 %902
  %v905 = vsel %vm112, %v899, %v903
  %v906 = vpack.c.bf16 %v905, %v905
  %v908 = vsel %vm277, %v906, 0
  %910 = vmatprep.subr.bf16.mxu0 0
  %911 = vmatpush1.bf16.msra.mxu0 0
  %912 = vmatprep.subr.bf16.mxu0 0
  %913 = vmatpush1.bf16.msra.mxu0 0
  %914 = vmatprep.subr.bf16.mxu0 0
  %915 = vmatpush1.bf16.msra.mxu0 0
  %916 = vmatprep.subr.bf16.mxu0 0
  %917 = vmatpush1.bf16.msra.mxu0 0
  %918 = vmatprep.subr.bf16.mxu0 0
  %919 = vmatpush1.bf16.msra.mxu0 %v272
  %920 = vmatprep.subr.bf16.mxu0 0
  %921 = vmatpush1.bf16.msra.mxu0 %v271
  %922 = vmatprep.subr.bf16.mxu0 0
  %923 = vmatpush1.bf16.msra.mxu0 %v270
  %924 = vmatprep.subr.bf16.mxu0 0
  %925 = vmatpush1.bf16.msra.mxu0 %v269
  %926 = vmatprep.subr.bf16.mxu0 0
  %927 = vmatpush2.bf16.msra.mxu0 0
  %928 = vmatprep.subr.bf16.mxu0 0
  %929 = vmatpush2.bf16.msra.mxu0 0
  %930 = vmatprep.subr.bf16.mxu0 0
  %931 = vmatpush2.bf16.msra.mxu0 0
  %932 = vmatprep.subr.bf16.mxu0 0
  %933 = vmatpush2.bf16.msra.mxu0 0
  %934 = vmatprep.subr.bf16.mxu0 0
  %935 = vmatpush2.bf16.msra.mxu0 0
  %936 = vmatprep.subr.bf16.mxu0 0
  %937 = vmatpush2.bf16.msra.mxu0 0
  %938 = vmatprep.subr.bf16.mxu0 0
  %939 = vmatpush2.bf16.msra.mxu0 0
  %940 = vmatprep.subr.bf16.mxu0 0
  %941 = vmatpush2.bf16.msra.mxu0 0
  %942 = vmatprep.mubr.bf16.mxu0 0
  %943 = vmatmul.mubr.bf16.gmra.mxu0 %v908
  %v944 = vpop.f32.mrf.mxu0
  %v945 = vadd.f32 %v251, %v944
  %v946 = vpop.f32.mrf.mxu0
  %v947 = vpop.f32.mrf.mxu0
  %v948 = vpop.f32.mrf.mxu0
  %949 = vdwg.mxu0
  %v950 = vxor.u32 %v896, 2147483648
  %v951 = vmul.f32 %v950, 1.442695
  %v952 = vpow.pop %v951
  %v953 = vadd.f32 %v952, 1.0
  %v954 = vrcp.pop %v953
  %v955 = vmul.f32 1.0, %v954
  %v956 = vtanh.pop %v896
  %v958 = vrot.slane %v815, 6
  %v960 = vmul.f32 %v955, %v958
  %962 = vrot.lane.b32.xlu0 %v956, 64
  %v963 = vpop.permute.xlu0 %962
  %v965 = vmul.f32 %v955, %v963
  %967 = vrot.lane.b32.xlu0 %v965, 32
  %v968 = vpop.permute.xlu0 %967
  %v970 = vadd.f32 %v960, %v968
  %v971 = vtanh.pop %v970
  %973 = vrot.lane.b32.xlu0 %v971, 64
  %v974 = vpop.permute.xlu0 %973
  %v976 = vmul.f32 %v955, %v974
  %v977 = vxor.u32 %v945, 2147483648
  %v978 = vmul.f32 %v977, 1.442695
  %v979 = vpow.pop %v978
  %v980 = vadd.f32 %v979, 1.0
  %v981 = vrcp.pop %v980
  %v982 = vmul.f32 1.0, %v981
  %v983 = vtanh.pop %v945
  %v984 = vmul.f32 %v982, %v839
  %986 = vrot.lane.b32.xlu0 %v983, 64
  %v987 = vpop.permute.xlu0 %986
  %v989 = vmul.f32 %v982, %v987
  %991 = vrot.lane.b32.xlu0 %v989, 32
  %v992 = vpop.permute.xlu0 %991
  %v994 = vadd.f32 %v984, %v992
  %v995 = vtanh.pop %v994
  %997 = vrot.lane.b32.xlu0 %v995, 64
  %v998 = vpop.permute.xlu0 %997
  %v1000 = vmul.f32 %v982, %v998
  %v1001 = vpack.c.bf16 %v976, %v976
  %v1003 = vrot.slane %v1001, 1
  %1004 = vrot.lane.b32.xlu0 %v1003, 32
  %v1005 = vpop.permute.xlu0 %1004
  %v1007 = vsel %vm112, %v1005, 0
  %1009 = vmatprep.subr.bf16.mxu0 0
  %1010 = vmatpush1.bf16.msra.mxu0 0
  %1011 = vmatprep.subr.bf16.mxu0 0
  %1012 = vmatpush1.bf16.msra.mxu0 0
  %1013 = vmatprep.subr.bf16.mxu0 0
  %1014 = vmatpush1.bf16.msra.mxu0 0
  %1015 = vmatprep.subr.bf16.mxu0 0
  %1016 = vmatpush1.bf16.msra.mxu0 0
  %1017 = vmatprep.subr.bf16.mxu0 0
  %1018 = vmatpush1.bf16.msra.mxu0 0
  %1019 = vmatprep.subr.bf16.mxu0 0
  %1020 = vmatpush1.bf16.msra.mxu0 0
  %1021 = vmatprep.subr.bf16.mxu0 0
  %1022 = vmatpush1.bf16.msra.mxu0 %v109
  %1023 = vmatprep.subr.bf16.mxu0 0
  %1024 = vmatpush1.bf16.msra.mxu0 %v108
  %1025 = vmatprep.subr.bf16.mxu0 0
  %1026 = vmatpush2.bf16.msra.mxu0 0
  %1027 = vmatprep.subr.bf16.mxu0 0
  %1028 = vmatpush2.bf16.msra.mxu0 0
  %1029 = vmatprep.subr.bf16.mxu0 0
  %1030 = vmatpush2.bf16.msra.mxu0 0
  %1031 = vmatprep.subr.bf16.mxu0 0
  %1032 = vmatpush2.bf16.msra.mxu0 0
  %1033 = vmatprep.subr.bf16.mxu0 0
  %1034 = vmatpush2.bf16.msra.mxu0 0
  %1035 = vmatprep.subr.bf16.mxu0 0
  %1036 = vmatpush2.bf16.msra.mxu0 0
  %1037 = vmatprep.subr.bf16.mxu0 0
  %1038 = vmatpush2.bf16.msra.mxu0 0
  %1039 = vmatprep.subr.bf16.mxu0 0
  %1040 = vmatpush2.bf16.msra.mxu0 0
  %1041 = vmatprep.mubr.bf16.mxu0 0
  %1042 = vmatmul.mubr.bf16.gmra.mxu0 %v1007
  %v1043 = vpop.f32.mrf.mxu0
  %v1044 = vadd.f32 0.0, %v1043
  %v1045 = vpop.f32.mrf.mxu0
  %v1046 = vpop.f32.mrf.mxu0
  %v1047 = vpop.f32.mrf.mxu0
  %1048 = vdwg.mxu0
  %v1050 = vrot.slane %v1044, 4
  %v1052 = vadd.f32 %v93, %v1050
  %1054 = vrot.lane.b32.xlu0 %v976, 32
  %v1055 = vpop.permute.xlu0 %1054
  %v1058 = vrot.slane %v1000, 6
  %1059 = vrot.lane.b32.xlu0 %v1058, 64
  %v1060 = vpop.permute.xlu0 %1059
  %v1062 = vsel %vm112, %v1055, %v1060
  %v1063 = vpack.c.bf16 %v1062, %v1062
  %v1065 = vrot.slane %v1063, 1
  %v1067 = vsel %vm277, %v1065, 0
  %1069 = vmatprep.subr.bf16.mxu0 0
  %1070 = vmatpush1.bf16.msra.mxu0 0
  %1071 = vmatprep.subr.bf16.mxu0 0
  %1072 = vmatpush1.bf16.msra.mxu0 0
  %1073 = vmatprep.subr.bf16.mxu0 0
  %1074 = vmatpush1.bf16.msra.mxu0 0
  %1075 = vmatprep.subr.bf16.mxu0 0
  %1076 = vmatpush1.bf16.msra.mxu0 0
  %1077 = vmatprep.subr.bf16.mxu0 0
  %1078 = vmatpush1.bf16.msra.mxu0 %v272
  %1079 = vmatprep.subr.bf16.mxu0 0
  %1080 = vmatpush1.bf16.msra.mxu0 %v271
  %1081 = vmatprep.subr.bf16.mxu0 0
  %1082 = vmatpush1.bf16.msra.mxu0 %v270
  %1083 = vmatprep.subr.bf16.mxu0 0
  %1084 = vmatpush1.bf16.msra.mxu0 %v269
  %1085 = vmatprep.subr.bf16.mxu0 0
  %1086 = vmatpush2.bf16.msra.mxu0 0
  %1087 = vmatprep.subr.bf16.mxu0 0
  %1088 = vmatpush2.bf16.msra.mxu0 0
  %1089 = vmatprep.subr.bf16.mxu0 0
  %1090 = vmatpush2.bf16.msra.mxu0 0
  %1091 = vmatprep.subr.bf16.mxu0 0
  %1092 = vmatpush2.bf16.msra.mxu0 0
  %1093 = vmatprep.subr.bf16.mxu0 0
  %1094 = vmatpush2.bf16.msra.mxu0 0
  %1095 = vmatprep.subr.bf16.mxu0 0
  %1096 = vmatpush2.bf16.msra.mxu0 0
  %1097 = vmatprep.subr.bf16.mxu0 0
  %1098 = vmatpush2.bf16.msra.mxu0 0
  %1099 = vmatprep.subr.bf16.mxu0 0
  %1100 = vmatpush2.bf16.msra.mxu0 0
  %1101 = vmatprep.mubr.bf16.mxu0 0
  %1102 = vmatmul.mubr.bf16.gmra.mxu0 %v1067
  %v1103 = vpop.f32.mrf.mxu0
  %v1104 = vadd.f32 %v251, %v1103
  %v1105 = vpop.f32.mrf.mxu0
  %v1106 = vpop.f32.mrf.mxu0
  %v1107 = vpop.f32.mrf.mxu0
  %1108 = vdwg.mxu0
  %v1109 = vxor.u32 %v1052, 2147483648
  %v1110 = vmul.f32 %v1109, 1.442695
  %v1111 = vpow.pop %v1110
  %v1112 = vadd.f32 %v1111, 1.0
  %v1113 = vrcp.pop %v1112
  %v1114 = vmul.f32 1.0, %v1113
  %v1115 = vtanh.pop %v1052
  %v1117 = vrot.slane %v970, 6
  %v1119 = vmul.f32 %v1114, %v1117
  %1121 = vrot.lane.b32.xlu0 %v1115, 64
  %v1122 = vpop.permute.xlu0 %1121
  %v1124 = vmul.f32 %v1114, %v1122
  %1126 = vrot.lane.b32.xlu0 %v1124, 32
  %v1127 = vpop.permute.xlu0 %1126
  %v1129 = vadd.f32 %v1119, %v1127
  %v1130 = vtanh.pop %v1129
  %1132 = vrot.lane.b32.xlu0 %v1130, 64
  %v1133 = vpop.permute.xlu0 %1132
  %v1135 = vmul.f32 %v1114, %v1133
  %v1136 = vxor.u32 %v1104, 2147483648
  %v1137 = vmul.f32 %v1136, 1.442695
  %v1138 = vpow.pop %v1137
  %v1139 = vadd.f32 %v1138, 1.0
  %v1140 = vrcp.pop %v1139
  %v1141 = vmul.f32 1.0, %v1140
  %v1142 = vtanh.pop %v1104
  %v1143 = vmul.f32 %v1141, %v994
  %1145 = vrot.lane.b32.xlu0 %v1142, 64
  %v1146 = vpop.permute.xlu0 %1145
  %v1148 = vmul.f32 %v1141, %v1146
  %1150 = vrot.lane.b32.xlu0 %v1148, 32
  %v1151 = vpop.permute.xlu0 %1150
  %v1153 = vadd.f32 %v1143, %v1151
  %v1154 = vtanh.pop %v1153
  %1156 = vrot.lane.b32.xlu0 %v1154, 64
  %v1157 = vpop.permute.xlu0 %1156
  %v1159 = vmul.f32 %v1141, %v1157
  %v1160 = vpack.c.bf16 %v1135, %v1135
  %v1162 = vrot.slane %v1160, 2
  %1163 = vrot.lane.b32.xlu0 %v1162, 32
  %v1164 = vpop.permute.xlu0 %1163
  %v1166 = vsel %vm112, %v1164, 0
  %1168 = vmatprep.subr.bf16.mxu0 0
  %1169 = vmatpush1.bf16.msra.mxu0 0
  %1170 = vmatprep.subr.bf16.mxu0 0
  %1171 = vmatpush1.bf16.msra.mxu0 0
  %1172 = vmatprep.subr.bf16.mxu0 0
  %1173 = vmatpush1.bf16.msra.mxu0 0
  %1174 = vmatprep.subr.bf16.mxu0 0
  %1175 = vmatpush1.bf16.msra.mxu0 0
  %1176 = vmatprep.subr.bf16.mxu0 0
  %1177 = vmatpush1.bf16.msra.mxu0 0
  %1178 = vmatprep.subr.bf16.mxu0 0
  %1179 = vmatpush1.bf16.msra.mxu0 0
  %1180 = vmatprep.subr.bf16.mxu0 0
  %1181 = vmatpush1.bf16.msra.mxu0 %v109
  %1182 = vmatprep.subr.bf16.mxu0 0
  %1183 = vmatpush1.bf16.msra.mxu0 %v108
  %1184 = vmatprep.subr.bf16.mxu0 0
  %1185 = vmatpush2.bf16.msra.mxu0 0
  %1186 = vmatprep.subr.bf16.mxu0 0
  %1187 = vmatpush2.bf16.msra.mxu0 0
  %1188 = vmatprep.subr.bf16.mxu0 0
  %1189 = vmatpush2.bf16.msra.mxu0 0
  %1190 = vmatprep.subr.bf16.mxu0 0
  %1191 = vmatpush2.bf16.msra.mxu0 0
  %1192 = vmatprep.subr.bf16.mxu0 0
  %1193 = vmatpush2.bf16.msra.mxu0 0
  %1194 = vmatprep.subr.bf16.mxu0 0
  %1195 = vmatpush2.bf16.msra.mxu0 0
  %1196 = vmatprep.subr.bf16.mxu0 0
  %1197 = vmatpush2.bf16.msra.mxu0 0
  %1198 = vmatprep.subr.bf16.mxu0 0
  %1199 = vmatpush2.bf16.msra.mxu0 0
  %1200 = vmatprep.mubr.bf16.mxu0 0
  %1201 = vmatmul.mubr.bf16.gmra.mxu0 %v1166
  %v1202 = vpop.f32.mrf.mxu0
  %v1203 = vadd.f32 0.0, %v1202
  %v1204 = vpop.f32.mrf.mxu0
  %v1205 = vpop.f32.mrf.mxu0
  %v1206 = vpop.f32.mrf.mxu0
  %1207 = vdwg.mxu0
  %v1209 = vrot.slane %v1203, 2
  %v1211 = vadd.f32 %v93, %v1209
  %1213 = vrot.lane.b32.xlu0 %v1135, 32
  %v1214 = vpop.permute.xlu0 %1213
  %v1217 = vrot.slane %v1159, 4
  %1218 = vrot.lane.b32.xlu0 %v1217, 64
  %v1219 = vpop.permute.xlu0 %1218
  %v1221 = vsel %vm112, %v1214, %v1219
  %v1222 = vpack.c.bf16 %v1221, %v1221
  %v1224 = vrot.slane %v1222, 2
  %v1226 = vsel %vm277, %v1224, 0
  %1228 = vmatprep.subr.bf16.mxu0 0
  %1229 = vmatpush1.bf16.msra.mxu0 0
  %1230 = vmatprep.subr.bf16.mxu0 0
  %1231 = vmatpush1.bf16.msra.mxu0 0
  %1232 = vmatprep.subr.bf16.mxu0 0
  %1233 = vmatpush1.bf16.msra.mxu0 0
  %1234 = vmatprep.subr.bf16.mxu0 0
  %1235 = vmatpush1.bf16.msra.mxu0 0
  %1236 = vmatprep.subr.bf16.mxu0 0
  %1237 = vmatpush1.bf16.msra.mxu0 %v272
  %1238 = vmatprep.subr.bf16.mxu0 0
  %1239 = vmatpush1.bf16.msra.mxu0 %v271
  %1240 = vmatprep.subr.bf16.mxu0 0
  %1241 = vmatpush1.bf16.msra.mxu0 %v270
  %1242 = vmatprep.subr.bf16.mxu0 0
  %1243 = vmatpush1.bf16.msra.mxu0 %v269
  %1244 = vmatprep.subr.bf16.mxu0 0
  %1245 = vmatpush2.bf16.msra.mxu0 0
  %1246 = vmatprep.subr.bf16.mxu0 0
  %1247 = vmatpush2.bf16.msra.mxu0 0
  %1248 = vmatprep.subr.bf16.mxu0 0
  %1249 = vmatpush2.bf16.msra.mxu0 0
  %1250 = vmatprep.subr.bf16.mxu0 0
  %1251 = vmatpush2.bf16.msra.mxu0 0
  %1252 = vmatprep.subr.bf16.mxu0 0
  %1253 = vmatpush2.bf16.msra.mxu0 0
  %1254 = vmatprep.subr.bf16.mxu0 0
  %1255 = vmatpush2.bf16.msra.mxu0 0
  %1256 = vmatprep.subr.bf16.mxu0 0
  %1257 = vmatpush2.bf16.msra.mxu0 0
  %1258 = vmatprep.subr.bf16.mxu0 0
  %1259 = vmatpush2.bf16.msra.mxu0 0
  %1260 = vmatprep.mubr.bf16.mxu0 0
  %1261 = vmatmul.mubr.bf16.gmra.mxu0 %v1226
  %v1262 = vpop.f32.mrf.mxu0
  %v1263 = vadd.f32 %v251, %v1262
  %v1264 = vpop.f32.mrf.mxu0
  %v1265 = vpop.f32.mrf.mxu0
  %v1266 = vpop.f32.mrf.mxu0
  %1267 = vdwg.mxu0
  %v1268 = vxor.u32 %v1211, 2147483648
  %v1269 = vmul.f32 %v1268, 1.442695
  %v1270 = vpow.pop %v1269
  %v1271 = vadd.f32 %v1270, 1.0
  %v1272 = vrcp.pop %v1271
  %v1273 = vmul.f32 1.0, %v1272
  %v1274 = vtanh.pop %v1211
  %v1276 = vrot.slane %v1129, 6
  %v1278 = vmul.f32 %v1273, %v1276
  %1280 = vrot.lane.b32.xlu0 %v1274, 64
  %v1281 = vpop.permute.xlu0 %1280
  %v1283 = vmul.f32 %v1273, %v1281
  %1285 = vrot.lane.b32.xlu0 %v1283, 32
  %v1286 = vpop.permute.xlu0 %1285
  %v1288 = vadd.f32 %v1278, %v1286
  %v1289 = vtanh.pop %v1288
  %1291 = vrot.lane.b32.xlu0 %v1289, 64
  %v1292 = vpop.permute.xlu0 %1291
  %v1294 = vmul.f32 %v1273, %v1292
  %v1295 = vxor.u32 %v1263, 2147483648
  %v1296 = vmul.f32 %v1295, 1.442695
  %v1297 = vpow.pop %v1296
  %v1298 = vadd.f32 %v1297, 1.0
  %v1299 = vrcp.pop %v1298
  %v1300 = vmul.f32 1.0, %v1299
  %v1301 = vtanh.pop %v1263
  %v1302 = vmul.f32 %v1300, %v1153
  %1304 = vrot.lane.b32.xlu0 %v1301, 64
  %v1305 = vpop.permute.xlu0 %1304
  %v1307 = vmul.f32 %v1300, %v1305
  %1309 = vrot.lane.b32.xlu0 %v1307, 32
  %v1310 = vpop.permute.xlu0 %1309
  %v1312 = vadd.f32 %v1302, %v1310
  %v1313 = vtanh.pop %v1312
  %1315 = vrot.lane.b32.xlu0 %v1313, 64
  %v1316 = vpop.permute.xlu0 %1315
  %v1318 = vmul.f32 %v1300, %v1316
  %1320 = vrot.lane.b32.xlu0 %v1294, 32
  %v1321 = vpop.permute.xlu0 %1320
  %v1324 = vrot.slane %v1318, 2
  %1325 = vrot.lane.b32.xlu0 %v1324, 64
  %v1326 = vpop.permute.xlu0 %1325
  %v1328 = vsel %vm112, %v1321, %v1326
  %v1329 = vpack.c.bf16 %v1328, %v1328
  %v1331 = vrot.slane %v1329, 3
  %v1333 = vsel %vm277, %v1331, 0
  %1335 = vmatprep.subr.bf16.mxu0 0
  %1336 = vmatpush1.bf16.msra.mxu0 0
  %1337 = vmatprep.subr.bf16.mxu0 0
  %1338 = vmatpush1.bf16.msra.mxu0 0
  %1339 = vmatprep.subr.bf16.mxu0 0
  %1340 = vmatpush1.bf16.msra.mxu0 0
  %1341 = vmatprep.subr.bf16.mxu0 0
  %1342 = vmatpush1.bf16.msra.mxu0 0
  %1343 = vmatprep.subr.bf16.mxu0 0
  %1344 = vmatpush1.bf16.msra.mxu0 %v272
  %1345 = vmatprep.subr.bf16.mxu0 0
  %1346 = vmatpush1.bf16.msra.mxu0 %v271
  %1347 = vmatprep.subr.bf16.mxu0 0
  %1348 = vmatpush1.bf16.msra.mxu0 %v270
  %1349 = vmatprep.subr.bf16.mxu0 0
  %1350 = vmatpush1.bf16.msra.mxu0 %v269
  %1351 = vmatprep.subr.bf16.mxu0 0
  %1352 = vmatpush2.bf16.msra.mxu0 0
  %1353 = vmatprep.subr.bf16.mxu0 0
  %1354 = vmatpush2.bf16.msra.mxu0 0
  %1355 = vmatprep.subr.bf16.mxu0 0
  %1356 = vmatpush2.bf16.msra.mxu0 0
  %1357 = vmatprep.subr.bf16.mxu0 0
  %1358 = vmatpush2.bf16.msra.mxu0 0
  %1359 = vmatprep.subr.bf16.mxu0 0
  %1360 = vmatpush2.bf16.msra.mxu0 0
  %1361 = vmatprep.subr.bf16.mxu0 0
  %1362 = vmatpush2.bf16.msra.mxu0 0
  %1363 = vmatprep.subr.bf16.mxu0 0
  %1364 = vmatpush2.bf16.msra.mxu0 0
  %1365 = vmatprep.subr.bf16.mxu0 0
  %1366 = vmatpush2.bf16.msra.mxu0 0
  %1367 = vmatprep.mubr.bf16.mxu0 0
  %1368 = vmatmul.mubr.bf16.gmra.mxu0 %v1333
  %v1369 = vpop.f32.mrf.mxu0
  %v1370 = vadd.f32 %v251, %v1369
  %v1371 = vpop.f32.mrf.mxu0
  %v1372 = vpop.f32.mrf.mxu0
  %v1373 = vpop.f32.mrf.mxu0
  %1374 = vdwg.mxu0
  %v1375 = vxor.u32 %v1370, 2147483648
  %v1376 = vmul.f32 %v1375, 1.442695
  %v1377 = vpow.pop %v1376
  %v1378 = vadd.f32 %v1377, 1.0
  %v1379 = vrcp.pop %v1378
  %v1380 = vmul.f32 1.0, %v1379
  %v1381 = vtanh.pop %v1370
  %v1382 = vmul.f32 %v1380, %v1312
  %1384 = vrot.lane.b32.xlu0 %v1381, 64
  %v1385 = vpop.permute.xlu0 %1384
  %v1387 = vmul.f32 %v1380, %v1385
  %1389 = vrot.lane.b32.xlu0 %v1387, 32
  %v1390 = vpop.permute.xlu0 %1389
  %v1392 = vadd.f32 %v1382, %v1390
  %v1393 = vtanh.pop %v1392
  %1395 = vrot.lane.b32.xlu0 %v1393, 64
  %v1396 = vpop.permute.xlu0 %1395
  %v1398 = vmul.f32 %v1380, %v1396
  %v1399 = vld [vmem:[%s6] sm:$0x1]
  %v1401 = vlaneseq
  %v1402 = vshrl.u32 %v1401, 7
  %v1403 = vsub.s32 0, %v1402
  %v1404 = vrot.slane %v1399, %v1403
  %1405 = vrot.lane.b32.xlu0 %v1404, 96
  %v1406 = vpop.permute.xlu0 %1405
  %v1408 = vmul.f32 %v1398, %v1406
  %1410 = vrot.lane.b32.xlu0 %v1408, 32
  %v1411 = vpop.permute.xlu0 %1410
  %vm1413 = vcmask 254976
  %v1414 = vsel %vm1413, %v1411, 0.0
  %1415 = vadd.xlane.f32.xlu0 %v1414
  %v1416 = vpop.xlane.xlu0 %1415
  %v1417 = vld [vmem:[#allocation2] sm:$0x1]
  %v1419 = vlaneseq
  %v1420 = vshrl.u32 %v1419, 7
  %v1421 = vsub.s32 0, %v1420
  %v1422 = vrot.slane %v1417, %v1421
  %v1424 = vadd.f32 %v1416, %v1422
  %vm1425 = vcmask 1024
  %1426 = vst.msk [vmem:[%s8] sm:$0x3] %vm1425, %v1424
  // Predicated region
  $region34: #{lstm_model_forward.1} parent=0 // pred_check
    _
  $region35: #{lstm_model_forward.1} parent=0 // pred_check_branch
    %1428 = sbr.rel (0) target = $region37
  $region36: #{lstm_model_forward.1} parent=0 // pred_region
    _
  $region37: #{lstm_model_forward.1} parent=0 // pred_fallthru
    _
  // Predicated region
  $region38: #{lstm_model_forward.1} parent=0 // pred_check
    _
  $region39: #{lstm_model_forward.1} parent=0 // pred_check_branch
    %1430 = sbr.rel (0) target = $region41
  $region40: #{lstm_model_forward.1} parent=0 // pred_region
    _
  $region41: #{lstm_model_forward.1} parent=0 // pred_fallthru
    _

</llo_original>
